<compile_context>
chip_gen: v7x
topology: tpu7x:2x2x1
jax: 0.10.0
libtpu: 0.0.40
codegen_flags: <defaults>
</compile_context>

<pallas_src>
import functools

import jax
import jax.numpy as jnp
from jax import lax
from jax.experimental import pallas as pl
from jax.experimental.pallas import tpu as pltpu
import numpy as np

_CLS_PAD = 64      # pred packs into lanes [0:64], S into lanes [64:128]
_NEG_INF = -1e30   # bias for padded (fake) classes => softmax weight exactly 0


def _round_up(a, b):
    return (a + b - 1) // b * b


def _pick_tile(total, cap):
    """Largest multiple of 128 that divides `total` (a multiple of 128) and is <= cap."""
    t = min(total, (cap // 128) * 128)
    while total % t:
        t -= 128
    return t


def _leaky(v, slope):
    return jnp.where(v >= 0.0, v, slope * v)


def mnn_gnn_kernel(mask_ref, remap_ref, a_ref, xw_ref, feat_ref, b1_ref,
                   bns_ref, bnt_ref, wl1_ref, bl1_ref, wl3_ref, bl3_ref,
                   tri_ref, out_ref, acc_ref, *, tk, nbk):
    """grid = (node-row tiles i ["parallel"], adjacency-reduction tiles k ["arbitrary"])."""
    i = pl.program_id(0)
    k = pl.program_id(1)

    @pl.when(k == 0)
    def _():
        acc_ref[...] = jnp.zeros_like(acc_ref)

    # GCN propagation: one lean bf16 matmul per step, f32 accumulation.  XW is hoisted
    # to the wrapper, resident in VMEM, and sliced here.  All-zero adjacency blocks are
    # skipped entirely (DMA elided via the remap index_map, matmul via pl.when).
    @pl.when(mask_ref[i * nbk + k] > 0)
    def _():
        xw = xw_ref[pl.ds(pl.multiple_of(k * tk, tk), tk), :]
        acc_ref[...] += jnp.dot(a_ref[...], xw, preferred_element_type=jnp.float32)

    @pl.when(k == pl.num_programs(1) - 1)
    def _():
        h = acc_ref[...] + b1_ref[...]
        # leaky_relu(0.1) applied twice == single leaky_relu with slope 0.01
        x = _leaky(h, 0.01)
        # eval-mode BatchNorm folded into one affine
        x = _leaky(x * bns_ref[...] + bnt_ref[...], 0.1)
        # residual mix with the raw (f32) input features
        x = feat_ref[...] + 0.01 * x
        # MLP head: bf16 operands, f32 accumulation (weights pre-cast in the wrapper,
        # activations cast once per row tile in the epilogue only).
        y = _leaky(jnp.dot(x.astype(jnp.bfloat16), wl1_ref[...],
                           preferred_element_type=jnp.float32) + bl1_ref[...], 0.1)
        logits = jnp.dot(y.astype(jnp.bfloat16), wl3_ref[...],
                         preferred_element_type=jnp.float32) + bl3_ref[...]
        # softmax over the padded class axis (padded logits carry -1e30 -> weight 0);
        # exact reciprocal (EUP slack in the epilogue -> free accuracy).
        m = jnp.max(logits, axis=1, keepdims=True)
        e = jnp.exp(logits - m)
        p = e * pl.reciprocal(jnp.sum(e, axis=1, keepdims=True))
        # cumprod(1 - p) == exp(cumsum(log(1 - p))); cumsum as one tiny f32 MXU matmul
        # against a static upper-triangular ones matrix (kept f32 for S precision).
        log_om = jnp.log(jnp.maximum(1.0 - p, 1e-30))
        s = jnp.exp(jnp.dot(log_om, tri_ref[...], preferred_element_type=jnp.float32))
        # pack pred | S into one lane-dense 128-wide slab -> single unmasked store
        out_ref[...] = jnp.concatenate([p, s], axis=1)


def build_gcn_adjacency(edge_index, num_nodes):
    """Densify edge_index into the symmetric-normalized GCN adjacency (with self loops)."""
    src = edge_index[0]
    dst = edge_index[1]
    a = jnp.zeros((num_nodes, num_nodes), jnp.float32)
    a = a.at[dst, src].set(1.0)                     # message flows src -> dst
    a = a + jnp.eye(num_nodes, dtype=jnp.float32)   # self loops
    deg = jnp.sum(a, axis=1)
    dinv = jnp.where(deg > 0, 1.0 / jnp.sqrt(deg), 0.0)
    return dinv[:, None] * a * dinv[None, :]


@functools.partial(jax.jit, static_argnames=("num_nodes", "num_classes"))
def mnn_gnn_forward(x, edge_index, params, *, num_nodes, num_classes):
    N = num_nodes
    H = x.shape[1]
    H2 = params["wl1t"].shape[1]
    # TODO(synk): num_classes > 64 needs two separate 128-lane outputs instead of packing.
    assert num_classes <= _CLS_PAD
    Cp = _CLS_PAD

    # TODO(synk): for genuinely sparse graphs a CSR / segment-sum kernel (scalar-prefetched
    # row offsets + neighbor ids driving a gather) would avoid materializing the dense N^2
    # adjacency at all; here we densify but elide all-zero blocks' DMA + matmul.
    a_norm = build_gcn_adjacency(edge_index, N)

    # ---- tiling / padding (pad only to the 128 layout quantum, not to the tile) -------
    Np = _round_up(N, 128)
    tm = _pick_tile(Np, 512)      # row tile; "parallel" -> sharded across v7x's 2 TCs
    tk = _pick_tile(Np, 2048)     # adjacency-reduction tile; single step for mid-size N
    nbi, nbk = Np // tm, Np // tk

    a_pad = jnp.pad(a_norm, ((0, Np - N), (0, Np - N)))
    x_pad = jnp.pad(x, ((0, Np - N), (0, 0)))

    # block-sparsity map: mask of nonzero (i,k) adjacency tiles + remap table that points
    # zero tiles at the previously fetched nonzero tile (so their DMA is skipped).
    blkmask = a_pad.reshape(nbi, tm, nbk, tk).sum(axis=(1, 3)) > 0
    kk = jnp.arange(nbk, dtype=jnp.int32)[None, :]
    remap = jnp.maximum(lax.cummax(jnp.where(blkmask, kk, -1), axis=1), 0)
    mask_flat = blkmask.astype(jnp.int32).reshape(-1)
    remap_flat = remap.astype(jnp.int32).reshape(-1)

    # hoisted XW = x @ W1^T : computed once in f32, cast to bf16 once, resident in VMEM
    xw = (x_pad @ params["w1t"]).astype(jnp.bfloat16)
    a_bf16 = a_pad.astype(jnp.bfloat16)

    # fold eval-mode BatchNorm into a single affine
    bn_scale = params["bn_gamma"] * lax.rsqrt(params["bn_var"] + 1e-5)
    bn_shift = params["bn_beta"] - params["bn_mean"] * bn_scale

    # lane-padded class head: zero-pad weights, -1e30-pad bias for the fake classes
    wl1_bf16 = params["wl1t"].astype(jnp.bfloat16)
    wl3_pad = jnp.pad(params["wl3t"],
                      ((0, 0), (0, Cp - num_classes))).astype(jnp.bfloat16)
    bl3_pad = jnp.pad(params["bl3"], ((0, 0), (0, Cp - num_classes)),
                      constant_values=_NEG_INF)
    tri = jnp.triu(jnp.ones((Cp, Cp), jnp.float32))   # T[k, j] = 1 iff k <= j

    kernel = functools.partial(mnn_gnn_kernel, tk=tk, nbk=nbk)

    in_specs = [
        pl.BlockSpec((tm, tk), lambda i, k, m, r: (i, r[i * nbk + k])),  # A (bf16), skip-remapped
        pl.BlockSpec((Np, H), lambda i, k, m, r: (0, 0)),                # XW (bf16), resident
        pl.BlockSpec((tm, H), lambda i, k, m, r: (i, 0)),                # raw features (f32)
        pl.BlockSpec((1, H), lambda i, k, m, r: (0, 0)),                 # b1
        pl.BlockSpec((1, H), lambda i, k, m, r: (0, 0)),                 # folded BN scale
        pl.BlockSpec((1, H), lambda i, k, m, r: (0, 0)),                 # folded BN shift
        pl.BlockSpec((H, H2), lambda i, k, m, r: (0, 0)),                # Wl1^T (bf16)
        pl.BlockSpec((1, H2), lambda i, k, m, r: (0, 0)),                # bl1
        pl.BlockSpec((H2, Cp), lambda i, k, m, r: (0, 0)),               # Wl3^T (bf16, padded)
        pl.BlockSpec((1, Cp), lambda i, k, m, r: (0, 0)),                # bl3 (padded, -1e30)
        pl.BlockSpec((Cp, Cp), lambda i, k, m, r: (0, 0)),               # upper-triangular ones
    ]
    out_specs = pl.BlockSpec((tm, 2 * Cp), lambda i, k, m, r: (i, 0))
    out_shape = jax.ShapeDtypeStruct((Np, 2 * Cp), jnp.float32)

    packed = pl.pallas_call(
        kernel,
        out_shape=out_shape,
        grid_spec=pltpu.PrefetchScalarGridSpec(
            num_scalar_prefetch=2,
            grid=(nbi, nbk),
            in_specs=in_specs,
            out_specs=out_specs,
            scratch_shapes=[pltpu.VMEM((tm, H), jnp.float32)]),
        compiler_params=pltpu.CompilerParams(
            dimension_semantics=("parallel", "arbitrary"),
            vmem_limit_bytes=32 * 1024 * 1024),
    )(mask_flat, remap_flat, a_bf16, xw, x_pad, params["b1"],
      bn_scale, bn_shift, wl1_bf16, params["bl1"], wl3_pad, bl3_pad, tri)

    predict = packed[:N, :num_classes]
    S = packed[:N, Cp:Cp + num_classes]
    return predict, S


def reference_forward(x, edge_index, params, num_nodes):
    """Pure-JAX f32 reference of the same eval-mode forward pass."""
    a_norm = build_gcn_adjacency(edge_index, num_nodes)
    feature = x
    h = a_norm @ (x @ params["w1t"]) + params["b1"]
    xx = jnp.where(h >= 0, h, 0.1 * h)
    xx = jnp.where(xx >= 0, xx, 0.1 * xx)
    xbn = (xx - params["bn_mean"]) / jnp.sqrt(params["bn_var"] + 1e-5) \
        * params["bn_gamma"] + params["bn_beta"]
    xx = jnp.where(xbn >= 0, xbn, 0.1 * xbn)
    xx = feature + 0.01 * xx
    y = xx @ params["wl1t"] + params["bl1"]
    y = jnp.where(y >= 0, y, 0.1 * y)
    z = y @ params["wl3t"] + params["bl3"]
    p = jax.nn.softmax(z, axis=1)
    S = jnp.cumprod(1.0 - p, axis=1)
    return p, S


def init_params(key, hidden_dim, num_classes):
    ks = jax.random.split(key, 8)
    h2 = hidden_dim // 2

    def glorot(k, shape):
        fan_in, fan_out = shape
        lim = np.sqrt(6.0 / (fan_in + fan_out))
        return jax.random.uniform(k, shape, jnp.float32, -lim, lim)

    return {
        # weights stored pre-transposed as (in, out) for direct x @ W
        "w1t": glorot(ks[0], (hidden_dim, hidden_dim)),
        "b1": jnp.zeros((1, hidden_dim), jnp.float32),
        "bn_gamma": 1.0 + 0.1 * jax.random.normal(ks[1], (1, hidden_dim), jnp.float32),
        "bn_beta": 0.1 * jax.random.normal(ks[2], (1, hidden_dim), jnp.float32),
        "bn_mean": 0.1 * jax.random.normal(ks[3], (1, hidden_dim), jnp.float32),
        "bn_var": 1.0 + 0.1 * jax.random.uniform(ks[4], (1, hidden_dim), jnp.float32),
        "wl1t": glorot(ks[5], (hidden_dim, h2)),
        "bl1": 0.01 * jax.random.normal(ks[6], (1, h2), jnp.float32),
        "wl3t": glorot(ks[7], (h2, num_classes)),
        "bl3": jnp.zeros((1, num_classes), jnp.float32),
    }


if __name__ == "__main__":
    N = 16            # nodes
    HIDDEN = 32       # args.projection_size
    NUM_CLASSES = 4

    key = jax.random.PRNGKey(0)
    kx, kp = jax.random.split(key)

    # deterministic node features
    x = jax.random.normal(kx, (N, HIDDEN), jnp.float32)

    # deterministic undirected ring graph: edge_index shape (2, 2N)
    src = np.arange(N, dtype=np.int32)
    dst = (src + 1) % N
    edge_index = jnp.asarray(
        np.stack([np.concatenate([src, dst]), np.concatenate([dst, src])], axis=0))

    params = init_params(kp, HIDDEN, NUM_CLASSES)

    predict, S = mnn_gnn_forward(x, edge_index, params,
                                 num_nodes=N, num_classes=NUM_CLASSES)
    jax.block_until_ready((predict, S))

    # sanity vs pure-JAX f32 reference.  Tolerances cover the bf16 adjacency/propagation
    # stream and bf16 MLP-head matmuls (f32 accumulation, exact softmax reciprocal).
    p_ref, s_ref = reference_forward(x, edge_index, params, N)
    assert predict.shape == (N, NUM_CLASSES) and S.shape == (N, NUM_CLASSES)
    assert np.all(np.isfinite(np.asarray(predict)))
    assert np.all(np.isfinite(np.asarray(S)))
    assert np.allclose(np.asarray(predict).sum(axis=1), 1.0, atol=1e-3)
    assert np.allclose(np.asarray(predict), np.asarray(p_ref), rtol=2e-2, atol=3e-3)
    assert np.allclose(np.asarray(S), np.asarray(s_ref), rtol=2e-2, atol=3e-3)

    print("KERNEL_OK")
</pallas_src>

<mosaic_0001>
module attributes {stable_mosaic.version = 11 : i64} {
  func.func @mnn_gnn_kernel(%arg0: i32, %arg1: i32, %arg2: memref<1xi32, #tpu.memory_space<smem>>, %arg3: memref<1xi32, #tpu.memory_space<smem>>, %arg4: memref<128x128xbf16, #tpu.memory_space<vmem>>, %arg5: memref<128x32xbf16, #tpu.memory_space<vmem>>, %arg6: memref<128x32xf32, #tpu.memory_space<vmem>>, %arg7: memref<1x32xf32, #tpu.memory_space<vmem>>, %arg8: memref<1x32xf32, #tpu.memory_space<vmem>>, %arg9: memref<1x32xf32, #tpu.memory_space<vmem>>, %arg10: memref<32x16xbf16, #tpu.memory_space<vmem>>, %arg11: memref<1x16xf32, #tpu.memory_space<vmem>>, %arg12: memref<16x64xbf16, #tpu.memory_space<vmem>>, %arg13: memref<1x64xf32, #tpu.memory_space<vmem>>, %arg14: memref<64x64xf32, #tpu.memory_space<vmem>>, %arg15: memref<128x128xf32, #tpu.memory_space<vmem>>, %arg16: memref<128x32xf32, #tpu.memory_space<vmem>>) attributes {dimension_semantics = [#tpu.dimension_semantics<parallel>, #tpu.dimension_semantics<arbitrary>], iteration_bounds = array<i64: 1, 1>, scalar_prefetch = 2 : i64, scratch_operands = 1 : i64, tpu.core_type = #tpu.core_type<tc>, window_params = [{transform_indices = @transform_0, window_bounds = array<i64: 128, 128>}, {pipeline_mode = #tpu.pipeline_mode<synchronous>, transform_indices = @transform_1, window_bounds = array<i64: 128, 32>}, {transform_indices = @transform_2, window_bounds = array<i64: 128, 32>}, {pipeline_mode = #tpu.pipeline_mode<synchronous>, transform_indices = @transform_3, window_bounds = array<i64: 1, 32>}, {pipeline_mode = #tpu.pipeline_mode<synchronous>, transform_indices = @transform_4, window_bounds = array<i64: 1, 32>}, {pipeline_mode = #tpu.pipeline_mode<synchronous>, transform_indices = @transform_5, window_bounds = array<i64: 1, 32>}, {pipeline_mode = #tpu.pipeline_mode<synchronous>, transform_indices = @transform_6, window_bounds = array<i64: 32, 16>}, {pipeline_mode = #tpu.pipeline_mode<synchronous>, transform_indices = @transform_7, window_bounds = array<i64: 1, 16>}, {pipeline_mode = #tpu.pipeline_mode<synchronous>, transform_indices = @transform_8, window_bounds = array<i64: 16, 64>}, {pipeline_mode = #tpu.pipeline_mode<synchronous>, transform_indices = @transform_9, window_bounds = array<i64: 1, 64>}, {pipeline_mode = #tpu.pipeline_mode<synchronous>, transform_indices = @transform_10, window_bounds = array<i64: 64, 64>}, {transform_indices = @transform_11, window_bounds = array<i64: 128, 128>}]} {
    %c0_i32 = arith.constant 0 : i32
    %0 = arith.cmpi eq, %arg1, %c0_i32 : i32
    %1 = arith.extui %0 : i1 to i32
    %c0_i32_0 = arith.constant 0 : i32
    %2 = arith.cmpi ne, %1, %c0_i32_0 : i32
    scf.if %2 {
      %cst = arith.constant 0.000000e+00 : f32
      %13 = vector.broadcast %cst : f32 to vector<128x32xf32>
      %c0 = arith.constant 0 : index
      %c0_5 = arith.constant 0 : index
      %14 = vector.load %arg16[%c0, %c0_5] : memref<128x32xf32, #tpu.memory_space<vmem>>, vector<128x32xf32>
      tpu.vector_store %arg16[%c0, %c0_5], %13 {strides = array<i32>} : memref<128x32xf32, #tpu.memory_space<vmem>>, vector<128x32xf32>,
    } else {
    }
    %c1_i32 = arith.constant 1 : i32
    %3 = arith.muli %arg0, %c1_i32 : i32
    %4 = arith.addi %3, %arg1 : i32
    %5 = arith.index_cast %4 : i32 to index
    %6 = memref.load %arg2[%5] : memref<1xi32, #tpu.memory_space<smem>>
    %c0_i32_1 = arith.constant 0 : i32
    %7 = arith.cmpi sgt, %6, %c0_i32_1 : i32
    %8 = arith.extui %7 : i1 to i32
    %c0_i32_2 = arith.constant 0 : i32
    %9 = arith.cmpi ne, %8, %c0_i32_2 : i32
    scf.if %9 {
      %c128_i32 = arith.constant 128 : i32
      %13 = arith.muli %arg1, %c128_i32 : i32
      %14 = tpu.assume_multiple %13, 128 : i32
      %15 = arith.index_cast %14 : i32 to index
      %c0 = arith.constant 0 : index
      %16 = vector.load %arg5[%15, %c0] : memref<128x32xbf16, #tpu.memory_space<vmem>>, vector<128x32xbf16>
      %c0_5 = arith.constant 0 : index
      %c0_6 = arith.constant 0 : index
      %17 = vector.load %arg16[%c0_5, %c0_6] : memref<128x32xf32, #tpu.memory_space<vmem>>, vector<128x32xf32>
      %c0_7 = arith.constant 0 : index
      %c0_8 = arith.constant 0 : index
      %18 = vector.load %arg4[%c0_7, %c0_8] : memref<128x128xbf16, #tpu.memory_space<vmem>>, vector<128x128xbf16>
      %cst = arith.constant dense<0.000000e+00> : vector<128x32xf32>
      %19 = tpu.matmul %18, %16, %cst {dimension_numbers = #tpu.dot_dimension_numbers<[1], [0], [0], [1], [0, 0, 1, 1], [], []>} : vector<128x128xbf16>, vector<128x32xbf16>, vector<128x32xf32> -> vector<128x32xf32>
      %20 = arith.addf %17, %19 : vector<128x32xf32>
      %c0_9 = arith.constant 0 : index
      %c0_10 = arith.constant 0 : index
      %21 = vector.load %arg16[%c0_9, %c0_10] : memref<128x32xf32, #tpu.memory_space<vmem>>, vector<128x32xf32>
      tpu.vector_store %arg16[%c0_9, %c0_10], %20 {strides = array<i32>} : memref<128x32xf32, #tpu.memory_space<vmem>>, vector<128x32xf32>,
    } else {
    }
    %c0_i32_3 = arith.constant 0 : i32
    %10 = arith.cmpi eq, %arg1, %c0_i32_3 : i32
    %11 = arith.extui %10 : i1 to i32
    %c0_i32_4 = arith.constant 0 : i32
    %12 = arith.cmpi ne, %11, %c0_i32_4 : i32
    scf.if %12 {
      %c0 = arith.constant 0 : index
      %c0_5 = arith.constant 0 : index
      %13 = vector.load %arg16[%c0, %c0_5] : memref<128x32xf32, #tpu.memory_space<vmem>>, vector<128x32xf32>
      %c0_6 = arith.constant 0 : index
      %c0_7 = arith.constant 0 : index
      %14 = vector.load %arg7[%c0_6, %c0_7] : memref<1x32xf32, #tpu.memory_space<vmem>>, vector<1x32xf32>
      %15 = vector.broadcast %14 : vector<1x32xf32> to vector<128x32xf32>
      %16 = arith.addf %13, %15 : vector<128x32xf32>
      %cst = arith.constant 0.000000e+00 : f32
      %17 = vector.broadcast %cst : f32 to vector<128x32xf32>
      %18 = arith.cmpf oge, %16, %17 : vector<128x32xf32>
      %cst_8 = arith.constant 0.00999999977 : f32
      %19 = vector.broadcast %cst_8 : f32 to vector<128x32xf32>
      %20 = arith.mulf %19, %16 : vector<128x32xf32>
      %21 = arith.select %18, %16, %20 : vector<128x32xi1>, vector<128x32xf32>
      %c0_9 = arith.constant 0 : index
      %c0_10 = arith.constant 0 : index
      %22 = vector.load %arg8[%c0_9, %c0_10] : memref<1x32xf32, #tpu.memory_space<vmem>>, vector<1x32xf32>
      %23 = vector.broadcast %22 : vector<1x32xf32> to vector<128x32xf32>
      %24 = arith.mulf %21, %23 : vector<128x32xf32>
      %c0_11 = arith.constant 0 : index
      %c0_12 = arith.constant 0 : index
      %25 = vector.load %arg9[%c0_11, %c0_12] : memref<1x32xf32, #tpu.memory_space<vmem>>, vector<1x32xf32>
      %26 = vector.broadcast %25 : vector<1x32xf32> to vector<128x32xf32>
      %27 = arith.addf %24, %26 : vector<128x32xf32>
      %cst_13 = arith.constant 0.000000e+00 : f32
      %28 = vector.broadcast %cst_13 : f32 to vector<128x32xf32>
      %29 = arith.cmpf oge, %27, %28 : vector<128x32xf32>
      %cst_14 = arith.constant 1.000000e-01 : f32
      %30 = vector.broadcast %cst_14 : f32 to vector<128x32xf32>
      %31 = arith.mulf %30, %27 : vector<128x32xf32>
      %32 = arith.select %29, %27, %31 : vector<128x32xi1>, vector<128x32xf32>
      %c0_15 = arith.constant 0 : index
      %c0_16 = arith.constant 0 : index
      %33 = vector.load %arg6[%c0_15, %c0_16] : memref<128x32xf32, #tpu.memory_space<vmem>>, vector<128x32xf32>
      %cst_17 = arith.constant 0.00999999977 : f32
      %34 = vector.broadcast %cst_17 : f32 to vector<128x32xf32>
      %35 = arith.mulf %34, %32 : vector<128x32xf32>
      %36 = arith.addf %33, %35 : vector<128x32xf32>
      %37 = arith.truncf %36 : vector<128x32xf32> to vector<128x32xbf16>
      %c0_18 = arith.constant 0 : index
      %c0_19 = arith.constant 0 : index
      %38 = vector.load %arg10[%c0_18, %c0_19] : memref<32x16xbf16, #tpu.memory_space<vmem>>, vector<32x16xbf16>
      %cst_20 = arith.constant dense<0.000000e+00> : vector<128x16xf32>
      %39 = tpu.matmul %37, %38, %cst_20 {dimension_numbers = #tpu.dot_dimension_numbers<[1], [0], [0], [1], [0, 0, 1, 1], [], []>} : vector<128x32xbf16>, vector<32x16xbf16>, vector<128x16xf32> -> vector<128x16xf32>
      %c0_21 = arith.constant 0 : index
      %c0_22 = arith.constant 0 : index
      %40 = vector.load %arg11[%c0_21, %c0_22] : memref<1x16xf32, #tpu.memory_space<vmem>>, vector<1x16xf32>
      %41 = vector.broadcast %40 : vector<1x16xf32> to vector<128x16xf32>
      %42 = arith.addf %39, %41 : vector<128x16xf32>
      %cst_23 = arith.constant 0.000000e+00 : f32
      %43 = vector.broadcast %cst_23 : f32 to vector<128x16xf32>
      %44 = arith.cmpf oge, %42, %43 : vector<128x16xf32>
      %cst_24 = arith.constant 1.000000e-01 : f32
      %45 = vector.broadcast %cst_24 : f32 to vector<128x16xf32>
      %46 = arith.mulf %45, %42 : vector<128x16xf32>
      %47 = arith.select %44, %42, %46 : vector<128x16xi1>, vector<128x16xf32>
      %48 = arith.truncf %47 : vector<128x16xf32> to vector<128x16xbf16>
      %c0_25 = arith.constant 0 : index
      %c0_26 = arith.constant 0 : index
      %49 = vector.load %arg12[%c0_25, %c0_26] : memref<16x64xbf16, #tpu.memory_space<vmem>>, vector<16x64xbf16>
      %cst_27 = arith.constant dense<0.000000e+00> : vector<128x64xf32>
      %50 = tpu.matmul %48, %49, %cst_27 {dimension_numbers = #tpu.dot_dimension_numbers<[1], [0], [0], [1], [0, 0, 1, 1], [], []>} : vector<128x16xbf16>, vector<16x64xbf16>, vector<128x64xf32> -> vector<128x64xf32>
      %c0_28 = arith.constant 0 : index
      %c0_29 = arith.constant 0 : index
      %51 = vector.load %arg13[%c0_28, %c0_29] : memref<1x64xf32, #tpu.memory_space<vmem>>, vector<1x64xf32>
      %52 = vector.broadcast %51 : vector<1x64xf32> to vector<128x64xf32>
      %53 = arith.addf %50, %52 : vector<128x64xf32>
      %cst_30 = arith.constant dense<0xFF800000> : vector<128xf32>
      %54 = vector.multi_reduction <maximumf>, %53, %cst_30 [1] : vector<128x64xf32> to vector<128xf32>
      %55 = vector.shape_cast %54 : vector<128xf32> to vector<128x1xf32>
      %56 = vector.broadcast %55 : vector<128x1xf32> to vector<128x64xf32>
      %57 = arith.subf %53, %56 : vector<128x64xf32>
      %58 = math.exp %57 : vector<128x64xf32>
      %cst_31 = arith.constant dense<0.000000e+00> : vector<128xf32>
      %59 = vector.multi_reduction <add>, %58, %cst_31 [1] : vector<128x64xf32> to vector<128xf32>
      %60 = vector.shape_cast %59 : vector<128xf32> to vector<128x1xf32>
      %61 = tpu.reciprocal %60 : vector<128x1xf32> -> vector<128x1xf32>
      %62 = vector.broadcast %61 : vector<128x1xf32> to vector<128x64xf32>
      %63 = arith.mulf %58, %62 : vector<128x64xf32>
      %cst_32 = arith.constant 1.000000e+00 : f32
      %64 = vector.broadcast %cst_32 : f32 to vector<128x64xf32>
      %65 = arith.subf %64, %63 : vector<128x64xf32>
      %cst_33 = arith.constant 1.000000e-30 : f32
      %66 = vector.broadcast %cst_33 : f32 to vector<128x64xf32>
      %67 = arith.maximumf %65, %66 : vector<128x64xf32>
      %68 = math.log %67 : vector<128x64xf32>
      %c0_34 = arith.constant 0 : index
      %c0_35 = arith.constant 0 : index
      %69 = vector.load %arg14[%c0_34, %c0_35] : memref<64x64xf32, #tpu.memory_space<vmem>>, vector<64x64xf32>
      %cst_36 = arith.constant dense<0.000000e+00> : vector<128x64xf32>
      %70 = tpu.matmul %68, %69, %cst_36 {dimension_numbers = #tpu.dot_dimension_numbers<[1], [0], [0], [1], [0, 0, 1, 1], [], []>} : vector<128x64xf32>, vector<64x64xf32>, vector<128x64xf32> -> vector<128x64xf32>
      %71 = math.exp %70 : vector<128x64xf32>
      %72 = tpu.concatenate %63, %71 in 1 : vector<128x64xf32>, vector<128x64xf32> -> vector<128x128xf32>
      %c0_37 = arith.constant 0 : index
      %c0_38 = arith.constant 0 : index
      %73 = vector.load %arg15[%c0_37, %c0_38] : memref<128x128xf32, #tpu.memory_space<vmem>>, vector<128x128xf32>
      tpu.vector_store %arg15[%c0_37, %c0_38], %72 {strides = array<i32>} : memref<128x128xf32, #tpu.memory_space<vmem>>, vector<128x128xf32>,
    } else {
    }
    return
  }
  func.func @transform_0(%arg0: i32, %arg1: i32, %arg2: memref<1xi32, #tpu.memory_space<smem>>, %arg3: memref<1xi32, #tpu.memory_space<smem>>) -> (i32, i32) {
    %c1_i32 = arith.constant 1 : i32
    %0 = arith.muli %arg0, %c1_i32 : i32
    %1 = arith.addi %0, %arg1 : i32
    %2 = arith.index_cast %1 : i32 to index
    %3 = memref.load %arg3[%2] : memref<1xi32, #tpu.memory_space<smem>>
    %c0_i32 = arith.constant 0 : i32
    return %arg0, %3 : i32, i32
  }
  func.func @transform_1(%arg0: i32, %arg1: i32, %arg2: memref<1xi32, #tpu.memory_space<smem>>, %arg3: memref<1xi32, #tpu.memory_space<smem>>) -> (i32, i32) {
    %c0_i32 = arith.constant 0 : i32
    %c0_i32_0 = arith.constant 0 : i32
    %c0_i32_1 = arith.constant 0 : i32
    return %c0_i32, %c0_i32_0 : i32, i32
  }
  func.func @transform_2(%arg0: i32, %arg1: i32, %arg2: memref<1xi32, #tpu.memory_space<smem>>, %arg3: memref<1xi32, #tpu.memory_space<smem>>) -> (i32, i32) {
    %c0_i32 = arith.constant 0 : i32
    %c0_i32_0 = arith.constant 0 : i32
    return %arg0, %c0_i32 : i32, i32
  }
  func.func @transform_3(%arg0: i32, %arg1: i32, %arg2: memref<1xi32, #tpu.memory_space<smem>>, %arg3: memref<1xi32, #tpu.memory_space<smem>>) -> (i32, i32) {
    %c0_i32 = arith.constant 0 : i32
    %c0_i32_0 = arith.constant 0 : i32
    %c0_i32_1 = arith.constant 0 : i32
    return %c0_i32, %c0_i32_0 : i32, i32
  }
  func.func @transform_4(%arg0: i32, %arg1: i32, %arg2: memref<1xi32, #tpu.memory_space<smem>>, %arg3: memref<1xi32, #tpu.memory_space<smem>>) -> (i32, i32) {
    %c0_i32 = arith.constant 0 : i32
    %c0_i32_0 = arith.constant 0 : i32
    %c0_i32_1 = arith.constant 0 : i32
    return %c0_i32, %c0_i32_0 : i32, i32
  }
  func.func @transform_5(%arg0: i32, %arg1: i32, %arg2: memref<1xi32, #tpu.memory_space<smem>>, %arg3: memref<1xi32, #tpu.memory_space<smem>>) -> (i32, i32) {
    %c0_i32 = arith.constant 0 : i32
    %c0_i32_0 = arith.constant 0 : i32
    %c0_i32_1 = arith.constant 0 : i32
    return %c0_i32, %c0_i32_0 : i32, i32
  }
  func.func @transform_6(%arg0: i32, %arg1: i32, %arg2: memref<1xi32, #tpu.memory_space<smem>>, %arg3: memref<1xi32, #tpu.memory_space<smem>>) -> (i32, i32) {
    %c0_i32 = arith.constant 0 : i32
    %c0_i32_0 = arith.constant 0 : i32
    %c0_i32_1 = arith.constant 0 : i32
    return %c0_i32, %c0_i32_0 : i32, i32
  }
  func.func @transform_7(%arg0: i32, %arg1: i32, %arg2: memref<1xi32, #tpu.memory_space<smem>>, %arg3: memref<1xi32, #tpu.memory_space<smem>>) -> (i32, i32) {
    %c0_i32 = arith.constant 0 : i32
    %c0_i32_0 = arith.constant 0 : i32
    %c0_i32_1 = arith.constant 0 : i32
    return %c0_i32, %c0_i32_0 : i32, i32
  }
  func.func @transform_8(%arg0: i32, %arg1: i32, %arg2: memref<1xi32, #tpu.memory_space<smem>>, %arg3: memref<1xi32, #tpu.memory_space<smem>>) -> (i32, i32) {
    %c0_i32 = arith.constant 0 : i32
    %c0_i32_0 = arith.constant 0 : i32
    %c0_i32_1 = arith.constant 0 : i32
    return %c0_i32, %c0_i32_0 : i32, i32
  }
  func.func @transform_9(%arg0: i32, %arg1: i32, %arg2: memref<1xi32, #tpu.memory_space<smem>>, %arg3: memref<1xi32, #tpu.memory_space<smem>>) -> (i32, i32) {
    %c0_i32 = arith.constant 0 : i32
    %c0_i32_0 = arith.constant 0 : i32
    %c0_i32_1 = arith.constant 0 : i32
    return %c0_i32, %c0_i32_0 : i32, i32
  }
  func.func @transform_10(%arg0: i32, %arg1: i32, %arg2: memref<1xi32, #tpu.memory_space<smem>>, %arg3: memref<1xi32, #tpu.memory_space<smem>>) -> (i32, i32) {
    %c0_i32 = arith.constant 0 : i32
    %c0_i32_0 = arith.constant 0 : i32
    %c0_i32_1 = arith.constant 0 : i32
    return %c0_i32, %c0_i32_0 : i32, i32
  }
  func.func @transform_11(%arg0: i32, %arg1: i32, %arg2: memref<1xi32, #tpu.memory_space<smem>>, %arg3: memref<1xi32, #tpu.memory_space<smem>>) -> (i32, i32) {
    %c0_i32 = arith.constant 0 : i32
    %c0_i32_0 = arith.constant 0 : i32
    return %arg0, %c0_i32 : i32, i32
  }
}

</mosaic_0001>

<llo_original>
// kernel: mnn_gnn_forward.1
$region0: #{mnn_gnn_forward.1}
  #allocation0 [shape = 'u32[]', space=smem, size = 0x4, offset = 0x4, fixed_abs, tag = 'smem constant byte address 0x4 - core index']
  #allocation1 [shape = 'u32[144,128]{1,0:T(1,128)}', space=vmem, size = 0x12000, scoped, tag = 'internal scratch']
  #allocation2 [shape = 'f32[128,32]{1,0:T(8,128)}', space=vmem, size = 0x10000, scoped, tag = 'scratch operand']
  #allocation3 [shape = 's32[1]{0}', space=sflag, size = 0x4, scoped, tag = 'scoped memory for mnn_gnn_forward.1']
  #allocation4 [shape = 's32[1]{0:T(128)S(6)}', space=smem, size = 0x200, scoped, tag = 'prefetched SMEM operand 0']
  #allocation5 [shape = 's32[1]{0:T(128)S(6)}', space=smem, size = 0x200, scoped, tag = 'prefetched SMEM operand 1']
  %s0 = inlined_call_operand.<no memory space> [shape: s32[1], index: 0, kind: input, shape index: {}]
  %s1 = inlined_call_operand.<no memory space> [shape: s32[1], index: 1, kind: input, shape index: {}]
  %s2 = inlined_call_operand.vmem [shape: bf16[128,128], index: 2, kind: input, shape index: {}]
  %s3 = inlined_call_operand.vmem [shape: bf16[128,32], index: 3, kind: input, shape index: {}]
  %s4 = inlined_call_operand.vmem [shape: f32[128,32], index: 4, kind: input, shape index: {}]
  %s5 = inlined_call_operand.vmem [shape: f32[1,32], index: 5, kind: input, shape index: {}]
  %s6 = inlined_call_operand.vmem [shape: f32[1,32], index: 6, kind: input, shape index: {}]
  %s7 = inlined_call_operand.vmem [shape: f32[1,32], index: 7, kind: input, shape index: {}]
  %s8 = inlined_call_operand.vmem [shape: bf16[32,16], index: 8, kind: input, shape index: {}]
  %s9 = inlined_call_operand.vmem [shape: f32[1,16], index: 9, kind: input, shape index: {}]
  %s10 = inlined_call_operand.vmem [shape: bf16[16,64], index: 10, kind: input, shape index: {}]
  %s11 = inlined_call_operand.vmem [shape: f32[1,64], index: 11, kind: input, shape index: {}]
  %s12 = inlined_call_operand.vmem [shape: f32[64,64], index: 12, kind: input, shape index: {}]
  %s13 = inlined_call_operand.vmem [shape: f32[128,128], index: 13, kind: output, shape index: {}]
  %s14 = sld [smem:[#allocation0]]
  $region66: #{mnn_gnn_forward.1} parent=0
    _
  %s16 = ssub.s32 1, %s14
  %s17 = scalar_select 0, %s16, %s14
  %18 = sst [smem:[#allocation4]] %s0
  %19 = sst [smem:[#allocation5]] %s1
  // Predicated region
  $region2: #{mnn_gnn_forward.1} parent=0 // pred_check
    _
  $region3: #{mnn_gnn_forward.1} parent=0 // pred_check_branch
    %21 = sbr.rel (0) target = $region5
  $region4: #{mnn_gnn_forward.1} parent=0 // pred_region
    %s22 = sadd.s32 0, 0
    %s23 = sld [smem:[#allocation5 + %s22]]
    %p24 = scmp.lt.s32.totalorder %s23, 0
    %s25 = scalar_select %p24, %s23, 0
    %s26 = smul.addr %s25, 4
    %s27 = scalar_lea.vmem %s2, %s26
    %s28 = sadd.s32 0, 0
    %s29 = sld [smem:[#allocation5 + %s28]]
  $region5: #{mnn_gnn_forward.1} parent=0 // pred_fallthru
    _
  // Predicated region
  $region6: #{mnn_gnn_forward.1} parent=0 // pred_check
    _
  $region7: #{mnn_gnn_forward.1} parent=0 // pred_check_branch
    %31 = sbr.rel (0) target = $region9
  $region8: #{mnn_gnn_forward.1} parent=0 // pred_region
    _
  $region9: #{mnn_gnn_forward.1} parent=0 // pred_fallthru
    _
  // Predicated region
  $region10: #{mnn_gnn_forward.1} parent=0 // pred_check
    _
  $region11: #{mnn_gnn_forward.1} parent=0 // pred_check_branch
    %33 = sbr.rel (0) target = $region13
  $region12: #{mnn_gnn_forward.1} parent=0 // pred_region
    _
  $region13: #{mnn_gnn_forward.1} parent=0 // pred_fallthru
    _
  // Predicated region
  $region14: #{mnn_gnn_forward.1} parent=0 // pred_check
    _
  $region15: #{mnn_gnn_forward.1} parent=0 // pred_check_branch
    %35 = sbr.rel (0) target = $region17
  $region16: #{mnn_gnn_forward.1} parent=0 // pred_region
    _
  $region17: #{mnn_gnn_forward.1} parent=0 // pred_fallthru
    _
  // Predicated region
  $region18: #{mnn_gnn_forward.1} parent=0 // pred_check
    _
  $region19: #{mnn_gnn_forward.1} parent=0 // pred_check_branch
    %37 = sbr.rel (0) target = $region21
  $region20: #{mnn_gnn_forward.1} parent=0 // pred_region
    _
  $region21: #{mnn_gnn_forward.1} parent=0 // pred_fallthru
    _
  // Predicated region
  $region22: #{mnn_gnn_forward.1} parent=0 // pred_check
    _
  $region23: #{mnn_gnn_forward.1} parent=0 // pred_check_branch
    %39 = sbr.rel (0) target = $region25
  $region24: #{mnn_gnn_forward.1} parent=0 // pred_region
    _
  $region25: #{mnn_gnn_forward.1} parent=0 // pred_fallthru
    _
  // Predicated region
  $region26: #{mnn_gnn_forward.1} parent=0 // pred_check
    _
  $region27: #{mnn_gnn_forward.1} parent=0 // pred_check_branch
    %41 = sbr.rel (0) target = $region29
  $region28: #{mnn_gnn_forward.1} parent=0 // pred_region
    _
  $region29: #{mnn_gnn_forward.1} parent=0 // pred_fallthru
    _
  // Predicated region
  $region30: #{mnn_gnn_forward.1} parent=0 // pred_check
    _
  $region31: #{mnn_gnn_forward.1} parent=0 // pred_check_branch
    %43 = sbr.rel (0) target = $region33
  $region32: #{mnn_gnn_forward.1} parent=0 // pred_region
    _
  $region33: #{mnn_gnn_forward.1} parent=0 // pred_fallthru
    _
  // Predicated region
  $region34: #{mnn_gnn_forward.1} parent=0 // pred_check
    _
  $region35: #{mnn_gnn_forward.1} parent=0 // pred_check_branch
    %45 = sbr.rel (0) target = $region37
  $region36: #{mnn_gnn_forward.1} parent=0 // pred_region
    _
  $region37: #{mnn_gnn_forward.1} parent=0 // pred_fallthru
    _
  // Predicated region
  $region38: #{mnn_gnn_forward.1} parent=0 // pred_check
    _
  $region39: #{mnn_gnn_forward.1} parent=0 // pred_check_branch
    %47 = sbr.rel (0) target = $region41
  $region40: #{mnn_gnn_forward.1} parent=0 // pred_region
    _
  $region41: #{mnn_gnn_forward.1} parent=0 // pred_fallthru
    _
  // Predicated region
  $region42: #{mnn_gnn_forward.1} parent=0 // pred_check
    _
  $region43: #{mnn_gnn_forward.1} parent=0 // pred_check_branch
    %49 = sbr.rel (0) target = $region45
  $region44: #{mnn_gnn_forward.1} parent=0 // pred_region
    _
  $region45: #{mnn_gnn_forward.1} parent=0 // pred_fallthru
    _
  %s50 = sadd.s32 0, 0
  %s51 = sld [smem:[#allocation5 + %s50]]
  %p52 = scmp.lt.s32.totalorder %s51, 0
  %s53 = scalar_select %p52, %s51, 0
  %s54 = smul.addr %s53, 4
  %s55 = scalar_lea.vmem %s2, %s54
  %s56 = sadd.s32 0, 0
  %s57 = sld [smem:[#allocation5 + %s56]]
  %p58 = scmp.lt.s32.totalorder %s57, 0
  %s59 = scalar_select %p58, %s57, 0
  %s60 = smul.addr %s59, 4
  %s61 = scalar_lea.vmem %s2, %s60
  %s62 = sadd.s32 0, 0
  %s63 = sld [smem:[#allocation5 + %s62]]
  %p65 = scmp.eq.s32.totalorder 0, 0
  // Predicated region
  $region46: #{mnn_gnn_forward.1} parent=0 // pred_check
    %p66 = pneg %p65
  $region47: #{mnn_gnn_forward.1} parent=0 // pred_check_branch
    %68 = sbr.rel (%p66) target = $region49
  $region48: #{mnn_gnn_forward.1} parent=0 // pred_region
    %vm69 = vcmask 261120
    %70 = vst.msk [vmem:[#allocation2] sm:$0xff] %vm69, 0.0
    %71 = vst.msk [vmem:[#allocation2 + $0x8] sm:$0xff] %vm69, 0.0
    %72 = vst.msk [vmem:[#allocation2 + $0x10] sm:$0xff] %vm69, 0.0
    %73 = vst.msk [vmem:[#allocation2 + $0x18] sm:$0xff] %vm69, 0.0
    %74 = vst.msk [vmem:[#allocation2 + $0x20] sm:$0xff] %vm69, 0.0
    %75 = vst.msk [vmem:[#allocation2 + $0x28] sm:$0xff] %vm69, 0.0
    %76 = vst.msk [vmem:[#allocation2 + $0x30] sm:$0xff] %vm69, 0.0
    %77 = vst.msk [vmem:[#allocation2 + $0x38] sm:$0xff] %vm69, 0.0
    %78 = vst.msk [vmem:[#allocation2 + $0x40] sm:$0xff] %vm69, 0.0
    %79 = vst.msk [vmem:[#allocation2 + $0x48] sm:$0xff] %vm69, 0.0
    %80 = vst.msk [vmem:[#allocation2 + $0x50] sm:$0xff] %vm69, 0.0
    %81 = vst.msk [vmem:[#allocation2 + $0x58] sm:$0xff] %vm69, 0.0
    %82 = vst.msk [vmem:[#allocation2 + $0x60] sm:$0xff] %vm69, 0.0
    %83 = vst.msk [vmem:[#allocation2 + $0x68] sm:$0xff] %vm69, 0.0
    %84 = vst.msk [vmem:[#allocation2 + $0x70] sm:$0xff] %vm69, 0.0
    %85 = vst.msk [vmem:[#allocation2 + $0x78] sm:$0xff] %vm69, 0.0
  $region49: #{mnn_gnn_forward.1} parent=0 // pred_fallthru
    _
  %s86 = sadd.s32 0, 0
  %s87 = sld [smem:[#allocation4 + %s86]]
  %p88 = scmp.gt.s32.totalorder %s87, 0
  // Predicated region
  $region50: #{mnn_gnn_forward.1} parent=0 // pred_check
    %p89 = pneg %p88
  $region51: #{mnn_gnn_forward.1} parent=0 // pred_check_branch
    %91 = sbr.rel (%p89) target = $region53
  $region52: #{mnn_gnn_forward.1} parent=0 // pred_region
    %s92 = smul.u32 0, 128
    %s93 = sshra.s32 %s92, 3
    %s94 = sand.u32 %s92, 7
    %s95 = smul.addr %s93, 4
    %s96 = scalar_lea.vmem %s3, %s95
    %v97 = vld [vmem:[%s96] sm:$0xf]
    %v98 = vld [vmem:[%s96 + $0x4] sm:$0xf]
    %v99 = vld [vmem:[%s96 + $0x8] sm:$0xf]
    %v100 = vld [vmem:[%s96 + $0xc] sm:$0xf]
    %v101 = vld [vmem:[%s96 + $0x10] sm:$0xf]
    %v102 = vld [vmem:[%s96 + $0x14] sm:$0xf]
    %v103 = vld [vmem:[%s96 + $0x18] sm:$0xf]
    %v104 = vld [vmem:[%s96 + $0x1c] sm:$0xf]
    %v105 = vld [vmem:[%s96 + $0x20] sm:$0xf]
    %v106 = vld [vmem:[%s96 + $0x24] sm:$0xf]
    %v107 = vld [vmem:[%s96 + $0x28] sm:$0xf]
    %v108 = vld [vmem:[%s96 + $0x2c] sm:$0xf]
    %v109 = vld [vmem:[%s96 + $0x30] sm:$0xf]
    %v110 = vld [vmem:[%s96 + $0x34] sm:$0xf]
    %v111 = vld [vmem:[%s96 + $0x38] sm:$0xf]
    %v112 = vld [vmem:[%s96 + $0x3c] sm:$0xf]
    %v113 = vld [vmem:[#allocation2] sm:$0xff]
    %v114 = vld [vmem:[#allocation2 + $0x8] sm:$0xff]
    %v115 = vld [vmem:[#allocation2 + $0x10] sm:$0xff]
    %v116 = vld [vmem:[#allocation2 + $0x18] sm:$0xff]
    %v117 = vld [vmem:[#allocation2 + $0x20] sm:$0xff]
    %v118 = vld [vmem:[#allocation2 + $0x28] sm:$0xff]
    %v119 = vld [vmem:[#allocation2 + $0x30] sm:$0xff]
    %v120 = vld [vmem:[#allocation2 + $0x38] sm:$0xff]
    %v121 = vld [vmem:[#allocation2 + $0x40] sm:$0xff]
    %v122 = vld [vmem:[#allocation2 + $0x48] sm:$0xff]
    %v123 = vld [vmem:[#allocation2 + $0x50] sm:$0xff]
    %v124 = vld [vmem:[#allocation2 + $0x58] sm:$0xff]
    %v125 = vld [vmem:[#allocation2 + $0x60] sm:$0xff]
    %v126 = vld [vmem:[#allocation2 + $0x68] sm:$0xff]
    %v127 = vld [vmem:[#allocation2 + $0x70] sm:$0xff]
    %v128 = vld [vmem:[#allocation2 + $0x78] sm:$0xff]
    %v129 = vld [vmem:[%s61] sm:$0xf]
    %v130 = vld [vmem:[%s61 + $0x4] sm:$0xf]
    %v131 = vld [vmem:[%s61 + $0x8] sm:$0xf]
    %v132 = vld [vmem:[%s61 + $0xc] sm:$0xf]
    %v133 = vld [vmem:[%s61 + $0x10] sm:$0xf]
    %v134 = vld [vmem:[%s61 + $0x14] sm:$0xf]
    %v135 = vld [vmem:[%s61 + $0x18] sm:$0xf]
    %v136 = vld [vmem:[%s61 + $0x1c] sm:$0xf]
    %v137 = vld [vmem:[%s61 + $0x20] sm:$0xf]
    %v138 = vld [vmem:[%s61 + $0x24] sm:$0xf]
    %v139 = vld [vmem:[%s61 + $0x28] sm:$0xf]
    %v140 = vld [vmem:[%s61 + $0x2c] sm:$0xf]
    %v141 = vld [vmem:[%s61 + $0x30] sm:$0xf]
    %v142 = vld [vmem:[%s61 + $0x34] sm:$0xf]
    %v143 = vld [vmem:[%s61 + $0x38] sm:$0xf]
    %v144 = vld [vmem:[%s61 + $0x3c] sm:$0xf]
    %v161 = vunpack.c.l.b16 %v129
    %v162 = vunpack.c.l.b16 %v130
    %v163 = vunpack.c.l.b16 %v131
    %v164 = vunpack.c.l.b16 %v132
    %v165 = vunpack.c.l.b16 %v133
    %v166 = vunpack.c.l.b16 %v134
    %v167 = vunpack.c.l.b16 %v135
    %v168 = vunpack.c.l.b16 %v136
    %v169 = vunpack.c.l.b16 %v137
    %v170 = vunpack.c.l.b16 %v138
    %v171 = vunpack.c.l.b16 %v139
    %v172 = vunpack.c.l.b16 %v140
    %v173 = vunpack.c.l.b16 %v141
    %v174 = vunpack.c.l.b16 %v142
    %v175 = vunpack.c.l.b16 %v143
    %v176 = vunpack.c.l.b16 %v144
    %v177 = vpack.c.b16 %v162, %v161
    %v178 = vpack.c.b16 %v164, %v163
    %v179 = vpack.c.b16 %v166, %v165
    %v180 = vpack.c.b16 %v168, %v167
    %v181 = vpack.c.b16 %v170, %v169
    %v182 = vpack.c.b16 %v172, %v171
    %v183 = vpack.c.b16 %v174, %v173
    %v184 = vpack.c.b16 %v176, %v175
    %v209 = vunpack.c.l.b16 %v97
    %v210 = vunpack.c.l.b16 %v98
    %v211 = vunpack.c.l.b16 %v99
    %v212 = vunpack.c.l.b16 %v100
    %v213 = vunpack.c.l.b16 %v101
    %v214 = vunpack.c.l.b16 %v102
    %v215 = vunpack.c.l.b16 %v103
    %v216 = vunpack.c.l.b16 %v104
    %v217 = vunpack.c.l.b16 %v105
    %v218 = vunpack.c.l.b16 %v106
    %v219 = vunpack.c.l.b16 %v107
    %v220 = vunpack.c.l.b16 %v108
    %v221 = vunpack.c.l.b16 %v109
    %v222 = vunpack.c.l.b16 %v110
    %v223 = vunpack.c.l.b16 %v111
    %v224 = vunpack.c.l.b16 %v112
    %v225 = vpack.c.b16 %v210, %v209
    %v226 = vpack.c.b16 %v212, %v211
    %v227 = vpack.c.b16 %v214, %v213
    %v228 = vpack.c.b16 %v216, %v215
    %v229 = vpack.c.b16 %v218, %v217
    %v230 = vpack.c.b16 %v220, %v219
    %v231 = vpack.c.b16 %v222, %v221
    %v232 = vpack.c.b16 %v224, %v223
    %241 = vmatprep.subr.bf16.mxu0 0
    %242 = vmatpush1.bf16.msra.mxu0 %v225
    %243 = vmatprep.subr.bf16.mxu0 0
    %244 = vmatpush1.bf16.msra.mxu0 %v226
    %245 = vmatprep.subr.bf16.mxu0 0
    %246 = vmatpush1.bf16.msra.mxu0 %v227
    %247 = vmatprep.subr.bf16.mxu0 0
    %248 = vmatpush1.bf16.msra.mxu0 %v228
    %249 = vmatprep.subr.bf16.mxu0 0
    %250 = vmatpush1.bf16.msra.mxu0 %v229
    %251 = vmatprep.subr.bf16.mxu0 0
    %252 = vmatpush1.bf16.msra.mxu0 %v230
    %253 = vmatprep.subr.bf16.mxu0 0
    %254 = vmatpush1.bf16.msra.mxu0 %v231
    %255 = vmatprep.subr.bf16.mxu0 0
    %256 = vmatpush1.bf16.msra.mxu0 %v232
    %257 = vmatprep.subr.bf16.mxu0 0
    %258 = vmatpush1.bf16.msra.mxu0 0
    %259 = vmatprep.subr.bf16.mxu0 0
    %260 = vmatpush1.bf16.msra.mxu0 0
    %261 = vmatprep.subr.bf16.mxu0 0
    %262 = vmatpush1.bf16.msra.mxu0 0
    %263 = vmatprep.subr.bf16.mxu0 0
    %264 = vmatpush1.bf16.msra.mxu0 0
    %265 = vmatprep.subr.bf16.mxu0 0
    %266 = vmatpush1.bf16.msra.mxu0 0
    %267 = vmatprep.subr.bf16.mxu0 0
    %268 = vmatpush1.bf16.msra.mxu0 0
    %269 = vmatprep.subr.bf16.mxu0 0
    %270 = vmatpush1.bf16.msra.mxu0 0
    %271 = vmatprep.subr.bf16.mxu0 0
    %272 = vmatpush1.bf16.msra.mxu0 0
    %273 = vmatprep.mubr.bf16.mxu0 0
    %274 = vmatmul.mubr.bf16.gmra.mrb[0].mxu0 %v177
    %v275 = vpop.f32.mrb[0].mxu0
    %v276 = vadd.f32 0.0, %v275
    %v277 = vpop.f32.mrb[0].mxu0
    %v278 = vpop.f32.mrb[0].mxu0
    %v279 = vadd.f32 0.0, %v278
    %v280 = vpop.f32.mrb[0].mxu0
    %281 = vmatprep.mubr.bf16.mxu0 0
    %282 = vmatmul.mubr.bf16.gmra.mrb[0].mxu0 %v178
    %v283 = vpop.f32.mrb[0].mxu0
    %v284 = vadd.f32 0.0, %v283
    %v285 = vpop.f32.mrb[0].mxu0
    %v286 = vpop.f32.mrb[0].mxu0
    %v287 = vadd.f32 0.0, %v286
    %v288 = vpop.f32.mrb[0].mxu0
    %289 = vmatprep.mubr.bf16.mxu0 0
    %290 = vmatmul.mubr.bf16.gmra.mrb[0].mxu0 %v179
    %v291 = vpop.f32.mrb[0].mxu0
    %v292 = vadd.f32 0.0, %v291
    %v293 = vpop.f32.mrb[0].mxu0
    %v294 = vpop.f32.mrb[0].mxu0
    %v295 = vadd.f32 0.0, %v294
    %v296 = vpop.f32.mrb[0].mxu0
    %297 = vmatprep.mubr.bf16.mxu0 0
    %298 = vmatmul.mubr.bf16.gmra.mrb[0].mxu0 %v180
    %v299 = vpop.f32.mrb[0].mxu0
    %v300 = vadd.f32 0.0, %v299
    %v301 = vpop.f32.mrb[0].mxu0
    %v302 = vpop.f32.mrb[0].mxu0
    %v303 = vadd.f32 0.0, %v302
    %v304 = vpop.f32.mrb[0].mxu0
    %305 = vmatprep.mubr.bf16.mxu0 0
    %306 = vmatmul.mubr.bf16.gmra.mrb[0].mxu0 %v181
    %v307 = vpop.f32.mrb[0].mxu0
    %v308 = vadd.f32 0.0, %v307
    %v309 = vpop.f32.mrb[0].mxu0
    %v310 = vpop.f32.mrb[0].mxu0
    %v311 = vadd.f32 0.0, %v310
    %v312 = vpop.f32.mrb[0].mxu0
    %313 = vmatprep.mubr.bf16.mxu0 0
    %314 = vmatmul.mubr.bf16.gmra.mrb[0].mxu0 %v182
    %v315 = vpop.f32.mrb[0].mxu0
    %v316 = vadd.f32 0.0, %v315
    %v317 = vpop.f32.mrb[0].mxu0
    %v318 = vpop.f32.mrb[0].mxu0
    %v319 = vadd.f32 0.0, %v318
    %v320 = vpop.f32.mrb[0].mxu0
    %321 = vmatprep.mubr.bf16.mxu0 0
    %322 = vmatmul.mubr.bf16.gmra.mrb[0].mxu0 %v183
    %v323 = vpop.f32.mrb[0].mxu0
    %v324 = vadd.f32 0.0, %v323
    %v325 = vpop.f32.mrb[0].mxu0
    %v326 = vpop.f32.mrb[0].mxu0
    %v327 = vadd.f32 0.0, %v326
    %v328 = vpop.f32.mrb[0].mxu0
    %329 = vmatprep.mubr.bf16.mxu0 0
    %330 = vmatmul.mubr.bf16.gmra.mrb[0].mxu0 %v184
    %v331 = vpop.f32.mrb[0].mxu0
    %v332 = vadd.f32 0.0, %v331
    %v333 = vpop.f32.mrb[0].mxu0
    %v334 = vpop.f32.mrb[0].mxu0
    %v335 = vadd.f32 0.0, %v334
    %v336 = vpop.f32.mrb[0].mxu0
    %337 = vdwg.mxu0
    %v338 = vadd.f32 %v113, %v276
    %v339 = vadd.f32 %v114, %v279
    %v340 = vadd.f32 %v115, %v284
    %v341 = vadd.f32 %v116, %v287
    %v342 = vadd.f32 %v117, %v292
    %v343 = vadd.f32 %v118, %v295
    %v344 = vadd.f32 %v119, %v300
    %v345 = vadd.f32 %v120, %v303
    %v346 = vadd.f32 %v121, %v308
    %v347 = vadd.f32 %v122, %v311
    %v348 = vadd.f32 %v123, %v316
    %v349 = vadd.f32 %v124, %v319
    %v350 = vadd.f32 %v125, %v324
    %v351 = vadd.f32 %v126, %v327
    %v352 = vadd.f32 %v127, %v332
    %v353 = vadd.f32 %v128, %v335
    %vm354 = vcmask 261120
    %355 = vst.msk [vmem:[#allocation2] sm:$0xff] %vm354, %v338
    %356 = vst.msk [vmem:[#allocation2 + $0x8] sm:$0xff] %vm354, %v339
    %357 = vst.msk [vmem:[#allocation2 + $0x10] sm:$0xff] %vm354, %v340
    %358 = vst.msk [vmem:[#allocation2 + $0x18] sm:$0xff] %vm354, %v341
    %359 = vst.msk [vmem:[#allocation2 + $0x20] sm:$0xff] %vm354, %v342
    %360 = vst.msk [vmem:[#allocation2 + $0x28] sm:$0xff] %vm354, %v343
    %361 = vst.msk [vmem:[#allocation2 + $0x30] sm:$0xff] %vm354, %v344
    %362 = vst.msk [vmem:[#allocation2 + $0x38] sm:$0xff] %vm354, %v345
    %363 = vst.msk [vmem:[#allocation2 + $0x40] sm:$0xff] %vm354, %v346
    %364 = vst.msk [vmem:[#allocation2 + $0x48] sm:$0xff] %vm354, %v347
    %365 = vst.msk [vmem:[#allocation2 + $0x50] sm:$0xff] %vm354, %v348
    %366 = vst.msk [vmem:[#allocation2 + $0x58] sm:$0xff] %vm354, %v349
    %367 = vst.msk [vmem:[#allocation2 + $0x60] sm:$0xff] %vm354, %v350
    %368 = vst.msk [vmem:[#allocation2 + $0x68] sm:$0xff] %vm354, %v351
    %369 = vst.msk [vmem:[#allocation2 + $0x70] sm:$0xff] %vm354, %v352
    %370 = vst.msk [vmem:[#allocation2 + $0x78] sm:$0xff] %vm354, %v353
  $region53: #{mnn_gnn_forward.1} parent=0 // pred_fallthru
    _
  // Predicated region
  $region54: #{mnn_gnn_forward.1} parent=0 // pred_check
    %p371 = pneg %p65
  $region55: #{mnn_gnn_forward.1} parent=0 // pred_check_branch
    %373 = sbr.rel (%p371) target = $region57
  $region56: #{mnn_gnn_forward.1} parent=0 // pred_region
    %v374 = vld [vmem:[#allocation2] sm:$0xff]
    %v375 = vld [vmem:[#allocation2 + $0x8] sm:$0xff]
    %v376 = vld [vmem:[#allocation2 + $0x10] sm:$0xff]
    %v377 = vld [vmem:[#allocation2 + $0x18] sm:$0xff]
    %v378 = vld [vmem:[#allocation2 + $0x20] sm:$0xff]
    %v379 = vld [vmem:[#allocation2 + $0x28] sm:$0xff]
    %v380 = vld [vmem:[#allocation2 + $0x30] sm:$0xff]
    %v381 = vld [vmem:[#allocation2 + $0x38] sm:$0xff]
    %v382 = vld [vmem:[#allocation2 + $0x40] sm:$0xff]
    %v383 = vld [vmem:[#allocation2 + $0x48] sm:$0xff]
    %v384 = vld [vmem:[#allocation2 + $0x50] sm:$0xff]
    %v385 = vld [vmem:[#allocation2 + $0x58] sm:$0xff]
    %v386 = vld [vmem:[#allocation2 + $0x60] sm:$0xff]
    %v387 = vld [vmem:[#allocation2 + $0x68] sm:$0xff]
    %v388 = vld [vmem:[#allocation2 + $0x70] sm:$0xff]
    %v389 = vld [vmem:[#allocation2 + $0x78] sm:$0xff]
    %v390 = vld [vmem:[%s5] sm:$0x1]
    %v392 = vlaneseq
    %v393 = vshrl.u32 %v392, 7
    %v394 = vsub.s32 0, %v393
    %v395 = vrot.slane %v390, %v394
    %v397 = vadd.f32 %v374, %v395
    %v398 = vadd.f32 %v375, %v395
    %v399 = vadd.f32 %v376, %v395
    %v400 = vadd.f32 %v377, %v395
    %v401 = vadd.f32 %v378, %v395
    %v402 = vadd.f32 %v379, %v395
    %v403 = vadd.f32 %v380, %v395
    %v404 = vadd.f32 %v381, %v395
    %v405 = vadd.f32 %v382, %v395
    %v406 = vadd.f32 %v383, %v395
    %v407 = vadd.f32 %v384, %v395
    %v408 = vadd.f32 %v385, %v395
    %v409 = vadd.f32 %v386, %v395
    %v410 = vadd.f32 %v387, %v395
    %v411 = vadd.f32 %v388, %v395
    %v412 = vadd.f32 %v389, %v395
    %vm413 = vcmp.ge.f32.partialorder %v397, 0.0
    %vm414 = vcmp.ge.f32.partialorder %v398, 0.0
    %vm415 = vcmp.ge.f32.partialorder %v399, 0.0
    %vm416 = vcmp.ge.f32.partialorder %v400, 0.0
    %vm417 = vcmp.ge.f32.partialorder %v401, 0.0
    %vm418 = vcmp.ge.f32.partialorder %v402, 0.0
    %vm419 = vcmp.ge.f32.partialorder %v403, 0.0
    %vm420 = vcmp.ge.f32.partialorder %v404, 0.0
    %vm421 = vcmp.ge.f32.partialorder %v405, 0.0
    %vm422 = vcmp.ge.f32.partialorder %v406, 0.0
    %vm423 = vcmp.ge.f32.partialorder %v407, 0.0
    %vm424 = vcmp.ge.f32.partialorder %v408, 0.0
    %vm425 = vcmp.ge.f32.partialorder %v409, 0.0
    %vm426 = vcmp.ge.f32.partialorder %v410, 0.0
    %vm427 = vcmp.ge.f32.partialorder %v411, 0.0
    %vm428 = vcmp.ge.f32.partialorder %v412, 0.0
    %v429 = vmul.f32 %v397, 0.01
    %v430 = vmul.f32 %v398, 0.01
    %v431 = vmul.f32 %v399, 0.01
    %v432 = vmul.f32 %v400, 0.01
    %v433 = vmul.f32 %v401, 0.01
    %v434 = vmul.f32 %v402, 0.01
    %v435 = vmul.f32 %v403, 0.01
    %v436 = vmul.f32 %v404, 0.01
    %v437 = vmul.f32 %v405, 0.01
    %v438 = vmul.f32 %v406, 0.01
    %v439 = vmul.f32 %v407, 0.01
    %v440 = vmul.f32 %v408, 0.01
    %v441 = vmul.f32 %v409, 0.01
    %v442 = vmul.f32 %v410, 0.01
    %v443 = vmul.f32 %v411, 0.01
    %v444 = vmul.f32 %v412, 0.01
    %v445 = vsel %vm413, %v397, %v429
    %v446 = vsel %vm414, %v398, %v430
    %v447 = vsel %vm415, %v399, %v431
    %v448 = vsel %vm416, %v400, %v432
    %v449 = vsel %vm417, %v401, %v433
    %v450 = vsel %vm418, %v402, %v434
    %v451 = vsel %vm419, %v403, %v435
    %v452 = vsel %vm420, %v404, %v436
    %v453 = vsel %vm421, %v405, %v437
    %v454 = vsel %vm422, %v406, %v438
    %v455 = vsel %vm423, %v407, %v439
    %v456 = vsel %vm424, %v408, %v440
    %v457 = vsel %vm425, %v409, %v441
    %v458 = vsel %vm426, %v410, %v442
    %v459 = vsel %vm427, %v411, %v443
    %v460 = vsel %vm428, %v412, %v444
    %v461 = vld [vmem:[%s6] sm:$0x1]
    %v463 = vlaneseq
    %v464 = vshrl.u32 %v463, 7
    %v465 = vsub.s32 0, %v464
    %v466 = vrot.slane %v461, %v465
    %v468 = vmul.f32 %v445, %v466
    %v469 = vmul.f32 %v446, %v466
    %v470 = vmul.f32 %v447, %v466
    %v471 = vmul.f32 %v448, %v466
    %v472 = vmul.f32 %v449, %v466
    %v473 = vmul.f32 %v450, %v466
    %v474 = vmul.f32 %v451, %v466
    %v475 = vmul.f32 %v452, %v466
    %v476 = vmul.f32 %v453, %v466
    %v477 = vmul.f32 %v454, %v466
    %v478 = vmul.f32 %v455, %v466
    %v479 = vmul.f32 %v456, %v466
    %v480 = vmul.f32 %v457, %v466
    %v481 = vmul.f32 %v458, %v466
    %v482 = vmul.f32 %v459, %v466
    %v483 = vmul.f32 %v460, %v466
    %v484 = vld [vmem:[%s7] sm:$0x1]
    %v486 = vlaneseq
    %v487 = vshrl.u32 %v486, 7
    %v488 = vsub.s32 0, %v487
    %v489 = vrot.slane %v484, %v488
    %v491 = vadd.f32 %v468, %v489
    %v492 = vadd.f32 %v469, %v489
    %v493 = vadd.f32 %v470, %v489
    %v494 = vadd.f32 %v471, %v489
    %v495 = vadd.f32 %v472, %v489
    %v496 = vadd.f32 %v473, %v489
    %v497 = vadd.f32 %v474, %v489
    %v498 = vadd.f32 %v475, %v489
    %v499 = vadd.f32 %v476, %v489
    %v500 = vadd.f32 %v477, %v489
    %v501 = vadd.f32 %v478, %v489
    %v502 = vadd.f32 %v479, %v489
    %v503 = vadd.f32 %v480, %v489
    %v504 = vadd.f32 %v481, %v489
    %v505 = vadd.f32 %v482, %v489
    %v506 = vadd.f32 %v483, %v489
    %vm507 = vcmp.ge.f32.partialorder %v491, 0.0
    %vm508 = vcmp.ge.f32.partialorder %v492, 0.0
    %vm509 = vcmp.ge.f32.partialorder %v493, 0.0
    %vm510 = vcmp.ge.f32.partialorder %v494, 0.0
    %vm511 = vcmp.ge.f32.partialorder %v495, 0.0
    %vm512 = vcmp.ge.f32.partialorder %v496, 0.0
    %vm513 = vcmp.ge.f32.partialorder %v497, 0.0
    %vm514 = vcmp.ge.f32.partialorder %v498, 0.0
    %vm515 = vcmp.ge.f32.partialorder %v499, 0.0
    %vm516 = vcmp.ge.f32.partialorder %v500, 0.0
    %vm517 = vcmp.ge.f32.partialorder %v501, 0.0
    %vm518 = vcmp.ge.f32.partialorder %v502, 0.0
    %vm519 = vcmp.ge.f32.partialorder %v503, 0.0
    %vm520 = vcmp.ge.f32.partialorder %v504, 0.0
    %vm521 = vcmp.ge.f32.partialorder %v505, 0.0
    %vm522 = vcmp.ge.f32.partialorder %v506, 0.0
    %v523 = vmul.f32 %v491, 0.1
    %v524 = vmul.f32 %v492, 0.1
    %v525 = vmul.f32 %v493, 0.1
    %v526 = vmul.f32 %v494, 0.1
    %v527 = vmul.f32 %v495, 0.1
    %v528 = vmul.f32 %v496, 0.1
    %v529 = vmul.f32 %v497, 0.1
    %v530 = vmul.f32 %v498, 0.1
    %v531 = vmul.f32 %v499, 0.1
    %v532 = vmul.f32 %v500, 0.1
    %v533 = vmul.f32 %v501, 0.1
    %v534 = vmul.f32 %v502, 0.1
    %v535 = vmul.f32 %v503, 0.1
    %v536 = vmul.f32 %v504, 0.1
    %v537 = vmul.f32 %v505, 0.1
    %v538 = vmul.f32 %v506, 0.1
    %v539 = vsel %vm507, %v491, %v523
    %v540 = vsel %vm508, %v492, %v524
    %v541 = vsel %vm509, %v493, %v525
    %v542 = vsel %vm510, %v494, %v526
    %v543 = vsel %vm511, %v495, %v527
    %v544 = vsel %vm512, %v496, %v528
    %v545 = vsel %vm513, %v497, %v529
    %v546 = vsel %vm514, %v498, %v530
    %v547 = vsel %vm515, %v499, %v531
    %v548 = vsel %vm516, %v500, %v532
    %v549 = vsel %vm517, %v501, %v533
    %v550 = vsel %vm518, %v502, %v534
    %v551 = vsel %vm519, %v503, %v535
    %v552 = vsel %vm520, %v504, %v536
    %v553 = vsel %vm521, %v505, %v537
    %v554 = vsel %vm522, %v506, %v538
    %v555 = vld [vmem:[%s4] sm:$0xff]
    %v556 = vld [vmem:[%s4 + $0x8] sm:$0xff]
    %v557 = vld [vmem:[%s4 + $0x10] sm:$0xff]
    %v558 = vld [vmem:[%s4 + $0x18] sm:$0xff]
    %v559 = vld [vmem:[%s4 + $0x20] sm:$0xff]
    %v560 = vld [vmem:[%s4 + $0x28] sm:$0xff]
    %v561 = vld [vmem:[%s4 + $0x30] sm:$0xff]
    %v562 = vld [vmem:[%s4 + $0x38] sm:$0xff]
    %v563 = vld [vmem:[%s4 + $0x40] sm:$0xff]
    %v564 = vld [vmem:[%s4 + $0x48] sm:$0xff]
    %v565 = vld [vmem:[%s4 + $0x50] sm:$0xff]
    %v566 = vld [vmem:[%s4 + $0x58] sm:$0xff]
    %v567 = vld [vmem:[%s4 + $0x60] sm:$0xff]
    %v568 = vld [vmem:[%s4 + $0x68] sm:$0xff]
    %v569 = vld [vmem:[%s4 + $0x70] sm:$0xff]
    %v570 = vld [vmem:[%s4 + $0x78] sm:$0xff]
    %v571 = vmul.f32 %v539, 0.01
    %v572 = vmul.f32 %v540, 0.01
    %v573 = vmul.f32 %v541, 0.01
    %v574 = vmul.f32 %v542, 0.01
    %v575 = vmul.f32 %v543, 0.01
    %v576 = vmul.f32 %v544, 0.01
    %v577 = vmul.f32 %v545, 0.01
    %v578 = vmul.f32 %v546, 0.01
    %v579 = vmul.f32 %v547, 0.01
    %v580 = vmul.f32 %v548, 0.01
    %v581 = vmul.f32 %v549, 0.01
    %v582 = vmul.f32 %v550, 0.01
    %v583 = vmul.f32 %v551, 0.01
    %v584 = vmul.f32 %v552, 0.01
    %v585 = vmul.f32 %v553, 0.01
    %v586 = vmul.f32 %v554, 0.01
    %v587 = vadd.f32 %v555, %v571
    %v588 = vadd.f32 %v556, %v572
    %v589 = vadd.f32 %v557, %v573
    %v590 = vadd.f32 %v558, %v574
    %v591 = vadd.f32 %v559, %v575
    %v592 = vadd.f32 %v560, %v576
    %v593 = vadd.f32 %v561, %v577
    %v594 = vadd.f32 %v562, %v578
    %v595 = vadd.f32 %v563, %v579
    %v596 = vadd.f32 %v564, %v580
    %v597 = vadd.f32 %v565, %v581
    %v598 = vadd.f32 %v566, %v582
    %v599 = vadd.f32 %v567, %v583
    %v600 = vadd.f32 %v568, %v584
    %v601 = vadd.f32 %v569, %v585
    %v602 = vadd.f32 %v570, %v586
    %v603 = vpack.c.bf16 %v588, %v587
    %v604 = vpack.c.bf16 %v590, %v589
    %v605 = vpack.c.bf16 %v592, %v591
    %v606 = vpack.c.bf16 %v594, %v593
    %v607 = vpack.c.bf16 %v596, %v595
    %v608 = vpack.c.bf16 %v598, %v597
    %v609 = vpack.c.bf16 %v600, %v599
    %v610 = vpack.c.bf16 %v602, %v601
    %v611 = vld [vmem:[%s8] sm:$0xf]
    %v612 = vld [vmem:[%s8 + $0x4] sm:$0xf]
    %v613 = vld [vmem:[%s8 + $0x8] sm:$0xf]
    %v614 = vld [vmem:[%s8 + $0xc] sm:$0xf]
    %v615 = vld [vmem:[%s9] sm:$0x1]
    %v617 = vlaneseq
    %v618 = vshrl.u32 %v617, 7
    %v619 = vsub.s32 0, %v618
    %v620 = vrot.slane %v615, %v619
    %v626 = vunpack.c.l.b16 %v611
    %v627 = vunpack.c.l.b16 %v612
    %v628 = vunpack.c.l.b16 %v613
    %v629 = vunpack.c.l.b16 %v614
    %v630 = vpack.c.b16 %v627, %v626
    %v631 = vpack.c.b16 %v629, %v628
    %vm634 = vcmask 261120
    %v636 = vsel %vm634, %v603, 0
    %v639 = vsel %vm634, %v604, 0
    %v642 = vsel %vm634, %v605, 0
    %v645 = vsel %vm634, %v606, 0
    %v648 = vsel %vm634, %v607, 0
    %v651 = vsel %vm634, %v608, 0
    %v654 = vsel %vm634, %v609, 0
    %v657 = vsel %vm634, %v610, 0
    %659 = vmatprep.subr.bf16.mxu0 0
    %660 = vmatpush1.bf16.msra.mxu0 %v630
    %661 = vmatprep.subr.bf16.mxu0 0
    %662 = vmatpush1.bf16.msra.mxu0 %v631
    %663 = vmatprep.subr.bf16.mxu0 0
    %664 = vmatpush1.bf16.msra.mxu0 0
    %665 = vmatprep.subr.bf16.mxu0 0
    %666 = vmatpush1.bf16.msra.mxu0 0
    %667 = vmatprep.subr.bf16.mxu0 0
    %668 = vmatpush1.bf16.msra.mxu0 0
    %669 = vmatprep.subr.bf16.mxu0 0
    %670 = vmatpush1.bf16.msra.mxu0 0
    %671 = vmatprep.subr.bf16.mxu0 0
    %672 = vmatpush1.bf16.msra.mxu0 0
    %673 = vmatprep.subr.bf16.mxu0 0
    %674 = vmatpush1.bf16.msra.mxu0 0
    %675 = vmatprep.subr.bf16.mxu0 0
    %676 = vmatpush1.bf16.msra.mxu0 0
    %677 = vmatprep.subr.bf16.mxu0 0
    %678 = vmatpush1.bf16.msra.mxu0 0
    %679 = vmatprep.subr.bf16.mxu0 0
    %680 = vmatpush1.bf16.msra.mxu0 0
    %681 = vmatprep.subr.bf16.mxu0 0
    %682 = vmatpush1.bf16.msra.mxu0 0
    %683 = vmatprep.subr.bf16.mxu0 0
    %684 = vmatpush1.bf16.msra.mxu0 0
    %685 = vmatprep.subr.bf16.mxu0 0
    %686 = vmatpush1.bf16.msra.mxu0 0
    %687 = vmatprep.subr.bf16.mxu0 0
    %688 = vmatpush1.bf16.msra.mxu0 0
    %689 = vmatprep.subr.bf16.mxu0 0
    %690 = vmatpush1.bf16.msra.mxu0 0
    %691 = vmatprep.mubr.bf16.mxu0 0
    %692 = vmatmul.mubr.bf16.gmra.mrb[0].mxu0 %v636
    %v693 = vpop.f32.mrb[0].mxu0
    %v694 = vadd.f32 %v620, %v693
    %v695 = vpop.f32.mrb[0].mxu0
    %v696 = vpop.f32.mrb[0].mxu0
    %v697 = vadd.f32 %v620, %v696
    %v698 = vpop.f32.mrb[0].mxu0
    %699 = vmatprep.mubr.bf16.mxu0 0
    %700 = vmatmul.mubr.bf16.gmra.mrb[0].mxu0 %v639
    %v701 = vpop.f32.mrb[0].mxu0
    %v702 = vadd.f32 %v620, %v701
    %v703 = vpop.f32.mrb[0].mxu0
    %v704 = vpop.f32.mrb[0].mxu0
    %v705 = vadd.f32 %v620, %v704
    %v706 = vpop.f32.mrb[0].mxu0
    %707 = vmatprep.mubr.bf16.mxu0 0
    %708 = vmatmul.mubr.bf16.gmra.mrb[0].mxu0 %v642
    %v709 = vpop.f32.mrb[0].mxu0
    %v710 = vadd.f32 %v620, %v709
    %v711 = vpop.f32.mrb[0].mxu0
    %v712 = vpop.f32.mrb[0].mxu0
    %v713 = vadd.f32 %v620, %v712
    %v714 = vpop.f32.mrb[0].mxu0
    %715 = vmatprep.mubr.bf16.mxu0 0
    %716 = vmatmul.mubr.bf16.gmra.mrb[0].mxu0 %v645
    %v717 = vpop.f32.mrb[0].mxu0
    %v718 = vadd.f32 %v620, %v717
    %v719 = vpop.f32.mrb[0].mxu0
    %v720 = vpop.f32.mrb[0].mxu0
    %v721 = vadd.f32 %v620, %v720
    %v722 = vpop.f32.mrb[0].mxu0
    %723 = vmatprep.mubr.bf16.mxu0 0
    %724 = vmatmul.mubr.bf16.gmra.mrb[0].mxu0 %v648
    %v725 = vpop.f32.mrb[0].mxu0
    %v726 = vadd.f32 %v620, %v725
    %v727 = vpop.f32.mrb[0].mxu0
    %v728 = vpop.f32.mrb[0].mxu0
    %v729 = vadd.f32 %v620, %v728
    %v730 = vpop.f32.mrb[0].mxu0
    %731 = vmatprep.mubr.bf16.mxu0 0
    %732 = vmatmul.mubr.bf16.gmra.mrb[0].mxu0 %v651
    %v733 = vpop.f32.mrb[0].mxu0
    %v734 = vadd.f32 %v620, %v733
    %v735 = vpop.f32.mrb[0].mxu0
    %v736 = vpop.f32.mrb[0].mxu0
    %v737 = vadd.f32 %v620, %v736
    %v738 = vpop.f32.mrb[0].mxu0
    %739 = vmatprep.mubr.bf16.mxu0 0
    %740 = vmatmul.mubr.bf16.gmra.mrb[0].mxu0 %v654
    %v741 = vpop.f32.mrb[0].mxu0
    %v742 = vadd.f32 %v620, %v741
    %v743 = vpop.f32.mrb[0].mxu0
    %v744 = vpop.f32.mrb[0].mxu0
    %v745 = vadd.f32 %v620, %v744
    %v746 = vpop.f32.mrb[0].mxu0
    %747 = vmatprep.mubr.bf16.mxu0 0
    %748 = vmatmul.mubr.bf16.gmra.mrb[0].mxu0 %v657
    %v749 = vpop.f32.mrb[0].mxu0
    %v750 = vadd.f32 %v620, %v749
    %v751 = vpop.f32.mrb[0].mxu0
    %v752 = vpop.f32.mrb[0].mxu0
    %v753 = vadd.f32 %v620, %v752
    %v754 = vpop.f32.mrb[0].mxu0
    %755 = vdwg.mxu0
    %vm756 = vcmp.ge.f32.partialorder %v694, 0.0
    %vm757 = vcmp.ge.f32.partialorder %v697, 0.0
    %vm758 = vcmp.ge.f32.partialorder %v702, 0.0
    %vm759 = vcmp.ge.f32.partialorder %v705, 0.0
    %vm760 = vcmp.ge.f32.partialorder %v710, 0.0
    %vm761 = vcmp.ge.f32.partialorder %v713, 0.0
    %vm762 = vcmp.ge.f32.partialorder %v718, 0.0
    %vm763 = vcmp.ge.f32.partialorder %v721, 0.0
    %vm764 = vcmp.ge.f32.partialorder %v726, 0.0
    %vm765 = vcmp.ge.f32.partialorder %v729, 0.0
    %vm766 = vcmp.ge.f32.partialorder %v734, 0.0
    %vm767 = vcmp.ge.f32.partialorder %v737, 0.0
    %vm768 = vcmp.ge.f32.partialorder %v742, 0.0
    %vm769 = vcmp.ge.f32.partialorder %v745, 0.0
    %vm770 = vcmp.ge.f32.partialorder %v750, 0.0
    %vm771 = vcmp.ge.f32.partialorder %v753, 0.0
    %v772 = vmul.f32 %v694, 0.1
    %v773 = vmul.f32 %v697, 0.1
    %v774 = vmul.f32 %v702, 0.1
    %v775 = vmul.f32 %v705, 0.1
    %v776 = vmul.f32 %v710, 0.1
    %v777 = vmul.f32 %v713, 0.1
    %v778 = vmul.f32 %v718, 0.1
    %v779 = vmul.f32 %v721, 0.1
    %v780 = vmul.f32 %v726, 0.1
    %v781 = vmul.f32 %v729, 0.1
    %v782 = vmul.f32 %v734, 0.1
    %v783 = vmul.f32 %v737, 0.1
    %v784 = vmul.f32 %v742, 0.1
    %v785 = vmul.f32 %v745, 0.1
    %v786 = vmul.f32 %v750, 0.1
    %v787 = vmul.f32 %v753, 0.1
    %v788 = vsel %vm756, %v694, %v772
    %v789 = vsel %vm757, %v697, %v773
    %v790 = vsel %vm758, %v702, %v774
    %v791 = vsel %vm759, %v705, %v775
    %v792 = vsel %vm760, %v710, %v776
    %v793 = vsel %vm761, %v713, %v777
    %v794 = vsel %vm762, %v718, %v778
    %v795 = vsel %vm763, %v721, %v779
    %v796 = vsel %vm764, %v726, %v780
    %v797 = vsel %vm765, %v729, %v781
    %v798 = vsel %vm766, %v734, %v782
    %v799 = vsel %vm767, %v737, %v783
    %v800 = vsel %vm768, %v742, %v784
    %v801 = vsel %vm769, %v745, %v785
    %v802 = vsel %vm770, %v750, %v786
    %v803 = vsel %vm771, %v753, %v787
    %v804 = vpack.c.bf16 %v789, %v788
    %v805 = vpack.c.bf16 %v791, %v790
    %v806 = vpack.c.bf16 %v793, %v792
    %v807 = vpack.c.bf16 %v795, %v794
    %v808 = vpack.c.bf16 %v797, %v796
    %v809 = vpack.c.bf16 %v799, %v798
    %v810 = vpack.c.bf16 %v801, %v800
    %v811 = vpack.c.bf16 %v803, %v802
    %v812 = vld [vmem:[%s10] sm:$0xf]
    %v813 = vld [vmem:[%s10 + $0x4] sm:$0xf]
    %v814 = vld [vmem:[%s11] sm:$0x1]
    %v816 = vlaneseq
    %v817 = vshrl.u32 %v816, 7
    %v818 = vsub.s32 0, %v817
    %v819 = vrot.slane %v814, %v818
    %v823 = vunpack.c.l.b16 %v812
    %v824 = vunpack.c.l.b16 %v813
    %v825 = vpack.c.b16 %v824, %v823
    %vm827 = vcmask 130048
    %v829 = vsel %vm827, %v804, 0
    %v832 = vsel %vm827, %v805, 0
    %v835 = vsel %vm827, %v806, 0
    %v838 = vsel %vm827, %v807, 0
    %v841 = vsel %vm827, %v808, 0
    %v844 = vsel %vm827, %v809, 0
    %v847 = vsel %vm827, %v810, 0
    %v850 = vsel %vm827, %v811, 0
    %852 = vmatprep.subr.bf16.mxu0 0
    %853 = vmatpush1.bf16.msra.mxu0 %v825
    %854 = vmatprep.subr.bf16.mxu0 0
    %855 = vmatpush1.bf16.msra.mxu0 0
    %856 = vmatprep.subr.bf16.mxu0 0
    %857 = vmatpush1.bf16.msra.mxu0 0
    %858 = vmatprep.subr.bf16.mxu0 0
    %859 = vmatpush1.bf16.msra.mxu0 0
    %860 = vmatprep.subr.bf16.mxu0 0
    %861 = vmatpush1.bf16.msra.mxu0 0
    %862 = vmatprep.subr.bf16.mxu0 0
    %863 = vmatpush1.bf16.msra.mxu0 0
    %864 = vmatprep.subr.bf16.mxu0 0
    %865 = vmatpush1.bf16.msra.mxu0 0
    %866 = vmatprep.subr.bf16.mxu0 0
    %867 = vmatpush1.bf16.msra.mxu0 0
    %868 = vmatprep.subr.bf16.mxu0 0
    %869 = vmatpush1.bf16.msra.mxu0 0
    %870 = vmatprep.subr.bf16.mxu0 0
    %871 = vmatpush1.bf16.msra.mxu0 0
    %872 = vmatprep.subr.bf16.mxu0 0
    %873 = vmatpush1.bf16.msra.mxu0 0
    %874 = vmatprep.subr.bf16.mxu0 0
    %875 = vmatpush1.bf16.msra.mxu0 0
    %876 = vmatprep.subr.bf16.mxu0 0
    %877 = vmatpush1.bf16.msra.mxu0 0
    %878 = vmatprep.subr.bf16.mxu0 0
    %879 = vmatpush1.bf16.msra.mxu0 0
    %880 = vmatprep.subr.bf16.mxu0 0
    %881 = vmatpush1.bf16.msra.mxu0 0
    %882 = vmatprep.subr.bf16.mxu0 0
    %883 = vmatpush1.bf16.msra.mxu0 0
    %884 = vmatprep.mubr.bf16.mxu0 0
    %885 = vmatmul.mubr.bf16.gmra.mrb[0].mxu0 %v829
    %v886 = vpop.f32.mrb[0].mxu0
    %v887 = vadd.f32 %v819, %v886
    %v888 = vpop.f32.mrb[0].mxu0
    %v889 = vpop.f32.mrb[0].mxu0
    %v890 = vadd.f32 %v819, %v889
    %v891 = vpop.f32.mrb[0].mxu0
    %892 = vmatprep.mubr.bf16.mxu0 0
    %893 = vmatmul.mubr.bf16.gmra.mrb[0].mxu0 %v832
    %v894 = vpop.f32.mrb[0].mxu0
    %v895 = vadd.f32 %v819, %v894
    %v896 = vpop.f32.mrb[0].mxu0
    %v897 = vpop.f32.mrb[0].mxu0
    %v898 = vadd.f32 %v819, %v897
    %v899 = vpop.f32.mrb[0].mxu0
    %900 = vmatprep.mubr.bf16.mxu0 0
    %901 = vmatmul.mubr.bf16.gmra.mrb[0].mxu0 %v835
    %v902 = vpop.f32.mrb[0].mxu0
    %v903 = vadd.f32 %v819, %v902
    %v904 = vpop.f32.mrb[0].mxu0
    %v905 = vpop.f32.mrb[0].mxu0
    %v906 = vadd.f32 %v819, %v905
    %v907 = vpop.f32.mrb[0].mxu0
    %908 = vmatprep.mubr.bf16.mxu0 0
    %909 = vmatmul.mubr.bf16.gmra.mrb[0].mxu0 %v838
    %v910 = vpop.f32.mrb[0].mxu0
    %v911 = vadd.f32 %v819, %v910
    %v912 = vpop.f32.mrb[0].mxu0
    %v913 = vpop.f32.mrb[0].mxu0
    %v914 = vadd.f32 %v819, %v913
    %v915 = vpop.f32.mrb[0].mxu0
    %916 = vmatprep.mubr.bf16.mxu0 0
    %917 = vmatmul.mubr.bf16.gmra.mrb[0].mxu0 %v841
    %v918 = vpop.f32.mrb[0].mxu0
    %v919 = vadd.f32 %v819, %v918
    %v920 = vpop.f32.mrb[0].mxu0
    %v921 = vpop.f32.mrb[0].mxu0
    %v922 = vadd.f32 %v819, %v921
    %v923 = vpop.f32.mrb[0].mxu0
    %924 = vmatprep.mubr.bf16.mxu0 0
    %925 = vmatmul.mubr.bf16.gmra.mrb[0].mxu0 %v844
    %v926 = vpop.f32.mrb[0].mxu0
    %v927 = vadd.f32 %v819, %v926
    %v928 = vpop.f32.mrb[0].mxu0
    %v929 = vpop.f32.mrb[0].mxu0
    %v930 = vadd.f32 %v819, %v929
    %v931 = vpop.f32.mrb[0].mxu0
    %932 = vmatprep.mubr.bf16.mxu0 0
    %933 = vmatmul.mubr.bf16.gmra.mrb[0].mxu0 %v847
    %v934 = vpop.f32.mrb[0].mxu0
    %v935 = vadd.f32 %v819, %v934
    %v936 = vpop.f32.mrb[0].mxu0
    %v937 = vpop.f32.mrb[0].mxu0
    %v938 = vadd.f32 %v819, %v937
    %v939 = vpop.f32.mrb[0].mxu0
    %940 = vmatprep.mubr.bf16.mxu0 0
    %941 = vmatmul.mubr.bf16.gmra.mrb[0].mxu0 %v850
    %v942 = vpop.f32.mrb[0].mxu0
    %v943 = vadd.f32 %v819, %v942
    %v944 = vpop.f32.mrb[0].mxu0
    %v945 = vpop.f32.mrb[0].mxu0
    %v946 = vadd.f32 %v819, %v945
    %v947 = vpop.f32.mrb[0].mxu0
    %948 = vdwg.mxu0
    %vm949 = vcmask 523264
    %v950 = vsel %vm949, %v887, -inf
    %951 = vmax.xlane.f32.xlu0 %v950
    %v952 = vpop.xlane.xlu0 %951
    %v953 = vsel %vm949, %v890, -inf
    %954 = vmax.xlane.f32.xlu0 %v953
    %v955 = vpop.xlane.xlu0 %954
    %v956 = vsel %vm949, %v895, -inf
    %957 = vmax.xlane.f32.xlu0 %v956
    %v958 = vpop.xlane.xlu0 %957
    %v959 = vsel %vm949, %v898, -inf
    %960 = vmax.xlane.f32.xlu0 %v959
    %v961 = vpop.xlane.xlu0 %960
    %v962 = vsel %vm949, %v903, -inf
    %963 = vmax.xlane.f32.xlu0 %v962
    %v964 = vpop.xlane.xlu0 %963
    %v965 = vsel %vm949, %v906, -inf
    %966 = vmax.xlane.f32.xlu0 %v965
    %v967 = vpop.xlane.xlu0 %966
    %v968 = vsel %vm949, %v911, -inf
    %969 = vmax.xlane.f32.xlu0 %v968
    %v970 = vpop.xlane.xlu0 %969
    %v971 = vsel %vm949, %v914, -inf
    %972 = vmax.xlane.f32.xlu0 %v971
    %v973 = vpop.xlane.xlu0 %972
    %v974 = vsel %vm949, %v919, -inf
    %975 = vmax.xlane.f32.xlu0 %v974
    %v976 = vpop.xlane.xlu0 %975
    %v977 = vsel %vm949, %v922, -inf
    %978 = vmax.xlane.f32.xlu0 %v977
    %v979 = vpop.xlane.xlu0 %978
    %v980 = vsel %vm949, %v927, -inf
    %981 = vmax.xlane.f32.xlu0 %v980
    %v982 = vpop.xlane.xlu0 %981
    %v983 = vsel %vm949, %v930, -inf
    %984 = vmax.xlane.f32.xlu0 %v983
    %v985 = vpop.xlane.xlu0 %984
    %v986 = vsel %vm949, %v935, -inf
    %987 = vmax.xlane.f32.xlu0 %v986
    %v988 = vpop.xlane.xlu0 %987
    %v989 = vsel %vm949, %v938, -inf
    %990 = vmax.xlane.f32.xlu0 %v989
    %v991 = vpop.xlane.xlu0 %990
    %v992 = vsel %vm949, %v943, -inf
    %993 = vmax.xlane.f32.xlu0 %v992
    %v994 = vpop.xlane.xlu0 %993
    %v995 = vsel %vm949, %v946, -inf
    %996 = vmax.xlane.f32.xlu0 %v995
    %v997 = vpop.xlane.xlu0 %996
    %v998 = vsub.f32 %v887, %v952
    %v999 = vsub.f32 %v890, %v955
    %v1000 = vsub.f32 %v895, %v958
    %v1001 = vsub.f32 %v898, %v961
    %v1002 = vsub.f32 %v903, %v964
    %v1003 = vsub.f32 %v906, %v967
    %v1004 = vsub.f32 %v911, %v970
    %v1005 = vsub.f32 %v914, %v973
    %v1006 = vsub.f32 %v919, %v976
    %v1007 = vsub.f32 %v922, %v979
    %v1008 = vsub.f32 %v927, %v982
    %v1009 = vsub.f32 %v930, %v985
    %v1010 = vsub.f32 %v935, %v988
    %v1011 = vsub.f32 %v938, %v991
    %v1012 = vsub.f32 %v943, %v994
    %v1013 = vsub.f32 %v946, %v997
    %v1014 = vmul.f32 %v998, 1.442695
    %v1015 = vpow.pop %v1014
    %v1016 = vmul.f32 %v999, 1.442695
    %v1017 = vpow.pop %v1016
    %v1018 = vmul.f32 %v1000, 1.442695
    %v1019 = vpow.pop %v1018
    %v1020 = vmul.f32 %v1001, 1.442695
    %v1021 = vpow.pop %v1020
    %v1022 = vmul.f32 %v1002, 1.442695
    %v1023 = vpow.pop %v1022
    %v1024 = vmul.f32 %v1003, 1.442695
    %v1025 = vpow.pop %v1024
    %v1026 = vmul.f32 %v1004, 1.442695
    %v1027 = vpow.pop %v1026
    %v1028 = vmul.f32 %v1005, 1.442695
    %v1029 = vpow.pop %v1028
    %v1030 = vmul.f32 %v1006, 1.442695
    %v1031 = vpow.pop %v1030
    %v1032 = vmul.f32 %v1007, 1.442695
    %v1033 = vpow.pop %v1032
    %v1034 = vmul.f32 %v1008, 1.442695
    %v1035 = vpow.pop %v1034
    %v1036 = vmul.f32 %v1009, 1.442695
    %v1037 = vpow.pop %v1036
    %v1038 = vmul.f32 %v1010, 1.442695
    %v1039 = vpow.pop %v1038
    %v1040 = vmul.f32 %v1011, 1.442695
    %v1041 = vpow.pop %v1040
    %v1042 = vmul.f32 %v1012, 1.442695
    %v1043 = vpow.pop %v1042
    %v1044 = vmul.f32 %v1013, 1.442695
    %v1045 = vpow.pop %v1044
    %v1046 = vsel %vm949, %v1015, 0.0
    %1047 = vadd.xlane.f32.xlu0 %v1046
    %v1048 = vpop.xlane.xlu0 %1047
    %v1049 = vsel %vm949, %v1017, 0.0
    %1050 = vadd.xlane.f32.xlu0 %v1049
    %v1051 = vpop.xlane.xlu0 %1050
    %v1052 = vsel %vm949, %v1019, 0.0
    %1053 = vadd.xlane.f32.xlu0 %v1052
    %v1054 = vpop.xlane.xlu0 %1053
    %v1055 = vsel %vm949, %v1021, 0.0
    %1056 = vadd.xlane.f32.xlu0 %v1055
    %v1057 = vpop.xlane.xlu0 %1056
    %v1058 = vsel %vm949, %v1023, 0.0
    %1059 = vadd.xlane.f32.xlu0 %v1058
    %v1060 = vpop.xlane.xlu0 %1059
    %v1061 = vsel %vm949, %v1025, 0.0
    %1062 = vadd.xlane.f32.xlu0 %v1061
    %v1063 = vpop.xlane.xlu0 %1062
    %v1064 = vsel %vm949, %v1027, 0.0
    %1065 = vadd.xlane.f32.xlu0 %v1064
    %v1066 = vpop.xlane.xlu0 %1065
    %v1067 = vsel %vm949, %v1029, 0.0
    %1068 = vadd.xlane.f32.xlu0 %v1067
    %v1069 = vpop.xlane.xlu0 %1068
    %v1070 = vsel %vm949, %v1031, 0.0
    %1071 = vadd.xlane.f32.xlu0 %v1070
    %v1072 = vpop.xlane.xlu0 %1071
    %v1073 = vsel %vm949, %v1033, 0.0
    %1074 = vadd.xlane.f32.xlu0 %v1073
    %v1075 = vpop.xlane.xlu0 %1074
    %v1076 = vsel %vm949, %v1035, 0.0
    %1077 = vadd.xlane.f32.xlu0 %v1076
    %v1078 = vpop.xlane.xlu0 %1077
    %v1079 = vsel %vm949, %v1037, 0.0
    %1080 = vadd.xlane.f32.xlu0 %v1079
    %v1081 = vpop.xlane.xlu0 %1080
    %v1082 = vsel %vm949, %v1039, 0.0
    %1083 = vadd.xlane.f32.xlu0 %v1082
    %v1084 = vpop.xlane.xlu0 %1083
    %v1085 = vsel %vm949, %v1041, 0.0
    %1086 = vadd.xlane.f32.xlu0 %v1085
    %v1087 = vpop.xlane.xlu0 %1086
    %v1088 = vsel %vm949, %v1043, 0.0
    %1089 = vadd.xlane.f32.xlu0 %v1088
    %v1090 = vpop.xlane.xlu0 %1089
    %v1091 = vsel %vm949, %v1045, 0.0
    %1092 = vadd.xlane.f32.xlu0 %v1091
    %v1093 = vpop.xlane.xlu0 %1092
    %v1094 = vrcp.pop %v1048
    %v1095 = vrcp.pop %v1051
    %v1096 = vrcp.pop %v1054
    %v1097 = vrcp.pop %v1057
    %v1098 = vrcp.pop %v1060
    %v1099 = vrcp.pop %v1063
    %v1100 = vrcp.pop %v1066
    %v1101 = vrcp.pop %v1069
    %v1102 = vrcp.pop %v1072
    %v1103 = vrcp.pop %v1075
    %v1104 = vrcp.pop %v1078
    %v1105 = vrcp.pop %v1081
    %v1106 = vrcp.pop %v1084
    %v1107 = vrcp.pop %v1087
    %v1108 = vrcp.pop %v1090
    %v1109 = vrcp.pop %v1093
    %v1110 = vmul.f32 %v1015, %v1094
    %v1111 = vmul.f32 %v1017, %v1095
    %v1112 = vmul.f32 %v1019, %v1096
    %v1113 = vmul.f32 %v1021, %v1097
    %v1114 = vmul.f32 %v1023, %v1098
    %v1115 = vmul.f32 %v1025, %v1099
    %v1116 = vmul.f32 %v1027, %v1100
    %v1117 = vmul.f32 %v1029, %v1101
    %v1118 = vmul.f32 %v1031, %v1102
    %v1119 = vmul.f32 %v1033, %v1103
    %v1120 = vmul.f32 %v1035, %v1104
    %v1121 = vmul.f32 %v1037, %v1105
    %v1122 = vmul.f32 %v1039, %v1106
    %v1123 = vmul.f32 %v1041, %v1107
    %v1124 = vmul.f32 %v1043, %v1108
    %v1125 = vmul.f32 %v1045, %v1109
    %v1126 = vsub.f32 1.0, %v1110
    %v1127 = vsub.f32 1.0, %v1111
    %v1128 = vsub.f32 1.0, %v1112
    %v1129 = vsub.f32 1.0, %v1113
    %v1130 = vsub.f32 1.0, %v1114
    %v1131 = vsub.f32 1.0, %v1115
    %v1132 = vsub.f32 1.0, %v1116
    %v1133 = vsub.f32 1.0, %v1117
    %v1134 = vsub.f32 1.0, %v1118
    %v1135 = vsub.f32 1.0, %v1119
    %v1136 = vsub.f32 1.0, %v1120
    %v1137 = vsub.f32 1.0, %v1121
    %v1138 = vsub.f32 1.0, %v1122
    %v1139 = vsub.f32 1.0, %v1123
    %v1140 = vsub.f32 1.0, %v1124
    %v1141 = vsub.f32 1.0, %v1125
    %v1142 = vmax.f32 %v1126, 1e-30
    %v1143 = vmax.f32 %v1127, 1e-30
    %v1144 = vmax.f32 %v1128, 1e-30
    %v1145 = vmax.f32 %v1129, 1e-30
    %v1146 = vmax.f32 %v1130, 1e-30
    %v1147 = vmax.f32 %v1131, 1e-30
    %v1148 = vmax.f32 %v1132, 1e-30
    %v1149 = vmax.f32 %v1133, 1e-30
    %v1150 = vmax.f32 %v1134, 1e-30
    %v1151 = vmax.f32 %v1135, 1e-30
    %v1152 = vmax.f32 %v1136, 1e-30
    %v1153 = vmax.f32 %v1137, 1e-30
    %v1154 = vmax.f32 %v1138, 1e-30
    %v1155 = vmax.f32 %v1139, 1e-30
    %v1156 = vmax.f32 %v1140, 1e-30
    %v1157 = vmax.f32 %v1141, 1e-30
    %v1158 = vlog2.pop %v1142
    %v1159 = vmul.f32 %v1158, 0.6931472
    %v1160 = vlog2.pop %v1143
    %v1161 = vmul.f32 %v1160, 0.6931472
    %v1162 = vlog2.pop %v1144
    %v1163 = vmul.f32 %v1162, 0.6931472
    %v1164 = vlog2.pop %v1145
    %v1165 = vmul.f32 %v1164, 0.6931472
    %v1166 = vlog2.pop %v1146
    %v1167 = vmul.f32 %v1166, 0.6931472
    %v1168 = vlog2.pop %v1147
    %v1169 = vmul.f32 %v1168, 0.6931472
    %v1170 = vlog2.pop %v1148
    %v1171 = vmul.f32 %v1170, 0.6931472
    %v1172 = vlog2.pop %v1149
    %v1173 = vmul.f32 %v1172, 0.6931472
    %v1174 = vlog2.pop %v1150
    %v1175 = vmul.f32 %v1174, 0.6931472
    %v1176 = vlog2.pop %v1151
    %v1177 = vmul.f32 %v1176, 0.6931472
    %v1178 = vlog2.pop %v1152
    %v1179 = vmul.f32 %v1178, 0.6931472
    %v1180 = vlog2.pop %v1153
    %v1181 = vmul.f32 %v1180, 0.6931472
    %v1182 = vlog2.pop %v1154
    %v1183 = vmul.f32 %v1182, 0.6931472
    %v1184 = vlog2.pop %v1155
    %v1185 = vmul.f32 %v1184, 0.6931472
    %v1186 = vlog2.pop %v1156
    %v1187 = vmul.f32 %v1186, 0.6931472
    %v1188 = vlog2.pop %v1157
    %v1189 = vmul.f32 %v1188, 0.6931472
    %v1190 = vld [vmem:[%s12] sm:$0xff]
    %v1191 = vld [vmem:[%s12 + $0x8] sm:$0xff]
    %v1192 = vld [vmem:[%s12 + $0x10] sm:$0xff]
    %v1193 = vld [vmem:[%s12 + $0x18] sm:$0xff]
    %v1194 = vld [vmem:[%s12 + $0x20] sm:$0xff]
    %v1195 = vld [vmem:[%s12 + $0x28] sm:$0xff]
    %v1196 = vld [vmem:[%s12 + $0x30] sm:$0xff]
    %v1197 = vld [vmem:[%s12 + $0x38] sm:$0xff]
    %v1199 = vsel %vm949, %v1159, 0
    %v1202 = vsel %vm949, %v1161, 0
    %v1205 = vsel %vm949, %v1163, 0
    %v1208 = vsel %vm949, %v1165, 0
    %v1211 = vsel %vm949, %v1167, 0
    %v1214 = vsel %vm949, %v1169, 0
    %v1217 = vsel %vm949, %v1171, 0
    %v1220 = vsel %vm949, %v1173, 0
    %v1223 = vsel %vm949, %v1175, 0
    %v1226 = vsel %vm949, %v1177, 0
    %v1229 = vsel %vm949, %v1179, 0
    %v1232 = vsel %vm949, %v1181, 0
    %v1235 = vsel %vm949, %v1183, 0
    %v1238 = vsel %vm949, %v1185, 0
    %v1241 = vsel %vm949, %v1187, 0
    %v1244 = vsel %vm949, %v1189, 0
    %1246 = vmatprep.subr.mxu0 0.0
    %1247 = vmatpush1.msra.mxu0 %v1190
    %1248 = vmatprep.subr.mxu0 0.0
    %1249 = vmatpush1.msra.mxu0 %v1191
    %1250 = vmatprep.subr.mxu0 0.0
    %1251 = vmatpush1.msra.mxu0 %v1192
    %1252 = vmatprep.subr.mxu0 0.0
    %1253 = vmatpush1.msra.mxu0 %v1193
    %1254 = vmatprep.subr.mxu0 0.0
    %1255 = vmatpush1.msra.mxu0 %v1194
    %1256 = vmatprep.subr.mxu0 0.0
    %1257 = vmatpush1.msra.mxu0 %v1195
    %1258 = vmatprep.subr.mxu0 0.0
    %1259 = vmatpush1.msra.mxu0 %v1196
    %1260 = vmatprep.subr.mxu0 0.0
    %1261 = vmatpush1.msra.mxu0 %v1197
    %1262 = vmatprep.subr.mxu0 0.0
    %1263 = vmatpush1.msra.mxu0 0.0
    %1264 = vmatprep.subr.mxu0 0.0
    %1265 = vmatpush1.msra.mxu0 0.0
    %1266 = vmatprep.subr.mxu0 0.0
    %1267 = vmatpush1.msra.mxu0 0.0
    %1268 = vmatprep.subr.mxu0 0.0
    %1269 = vmatpush1.msra.mxu0 0.0
    %1270 = vmatprep.subr.mxu0 0.0
    %1271 = vmatpush1.msra.mxu0 0.0
    %1272 = vmatprep.subr.mxu0 0.0
    %1273 = vmatpush1.msra.mxu0 0.0
    %1274 = vmatprep.subr.mxu0 0.0
    %1275 = vmatpush1.msra.mxu0 0.0
    %1276 = vmatprep.subr.mxu0 0.0
    %1277 = vmatpush1.msra.mxu0 0.0
    %1278 = vmatprep.subr.mxu0 0.0
    %1279 = vmatpush1.msra.mxu0 0.0
    %1280 = vmatprep.subr.mxu0 0.0
    %1281 = vmatpush1.msra.mxu0 0.0
    %1282 = vmatprep.subr.mxu0 0.0
    %1283 = vmatpush1.msra.mxu0 0.0
    %1284 = vmatprep.subr.mxu0 0.0
    %1285 = vmatpush1.msra.mxu0 0.0
    %1286 = vmatprep.subr.mxu0 0.0
    %1287 = vmatpush1.msra.mxu0 0.0
    %1288 = vmatprep.subr.mxu0 0.0
    %1289 = vmatpush1.msra.mxu0 0.0
    %1290 = vmatprep.subr.mxu0 0.0
    %1291 = vmatpush1.msra.mxu0 0.0
    %1292 = vmatprep.subr.mxu0 0.0
    %1293 = vmatpush1.msra.mxu0 0.0
    %1294 = vmatprep.subr.mxu0 0.0
    %1295 = vmatpush1.msra.mxu0 0.0
    %1296 = vmatprep.subr.mxu0 0.0
    %1297 = vmatpush1.msra.mxu0 0.0
    %1298 = vmatprep.subr.mxu0 0.0
    %1299 = vmatpush1.msra.mxu0 0.0
    %1300 = vmatprep.subr.mxu0 0.0
    %1301 = vmatpush1.msra.mxu0 0.0
    %1302 = vmatprep.subr.mxu0 0.0
    %1303 = vmatpush1.msra.mxu0 0.0
    %1304 = vmatprep.subr.mxu0 0.0
    %1305 = vmatpush1.msra.mxu0 0.0
    %1306 = vmatprep.subr.mxu0 0.0
    %1307 = vmatpush1.msra.mxu0 0.0
    %1308 = vmatprep.subr.mxu0 0.0
    %1309 = vmatpush1.msra.mxu0 0.0
    %1310 = vmatprep.mubr.f32.mxu0 0.0
    %1311 = vmatmul.mubr.f32.gmra.mrb[0].mxu0 %v1199
    %v1312 = vpop.f32.mrb[0].mxu0
    %v1313 = vadd.f32 0.0, %v1312
    %v1314 = vpop.f32.mrb[0].mxu0
    %1315 = vmatprep.mubr.f32.mxu0 0.0
    %1316 = vmatmul.mubr.f32.gmra.mrb[0].mxu0 %v1202
    %v1317 = vpop.f32.mrb[0].mxu0
    %v1318 = vadd.f32 0.0, %v1317
    %v1319 = vpop.f32.mrb[0].mxu0
    %1320 = vmatprep.mubr.f32.mxu0 0.0
    %1321 = vmatmul.mubr.f32.gmra.mrb[0].mxu0 %v1205
    %v1322 = vpop.f32.mrb[0].mxu0
    %v1323 = vadd.f32 0.0, %v1322
    %v1324 = vpop.f32.mrb[0].mxu0
    %1325 = vmatprep.mubr.f32.mxu0 0.0
    %1326 = vmatmul.mubr.f32.gmra.mrb[0].mxu0 %v1208
    %v1327 = vpop.f32.mrb[0].mxu0
    %v1328 = vadd.f32 0.0, %v1327
    %v1329 = vpop.f32.mrb[0].mxu0
    %1330 = vmatprep.mubr.f32.mxu0 0.0
    %1331 = vmatmul.mubr.f32.gmra.mrb[0].mxu0 %v1211
    %v1332 = vpop.f32.mrb[0].mxu0
    %v1333 = vadd.f32 0.0, %v1332
    %v1334 = vpop.f32.mrb[0].mxu0
    %1335 = vmatprep.mubr.f32.mxu0 0.0
    %1336 = vmatmul.mubr.f32.gmra.mrb[0].mxu0 %v1214
    %v1337 = vpop.f32.mrb[0].mxu0
    %v1338 = vadd.f32 0.0, %v1337
    %v1339 = vpop.f32.mrb[0].mxu0
    %1340 = vmatprep.mubr.f32.mxu0 0.0
    %1341 = vmatmul.mubr.f32.gmra.mrb[0].mxu0 %v1217
    %v1342 = vpop.f32.mrb[0].mxu0
    %v1343 = vadd.f32 0.0, %v1342
    %v1344 = vpop.f32.mrb[0].mxu0
    %1345 = vmatprep.mubr.f32.mxu0 0.0
    %1346 = vmatmul.mubr.f32.gmra.mrb[0].mxu0 %v1220
    %v1347 = vpop.f32.mrb[0].mxu0
    %v1348 = vadd.f32 0.0, %v1347
    %v1349 = vpop.f32.mrb[0].mxu0
    %1350 = vmatprep.mubr.f32.mxu0 0.0
    %1351 = vmatmul.mubr.f32.gmra.mrb[0].mxu0 %v1223
    %v1352 = vpop.f32.mrb[0].mxu0
    %v1353 = vadd.f32 0.0, %v1352
    %v1354 = vpop.f32.mrb[0].mxu0
    %1355 = vmatprep.mubr.f32.mxu0 0.0
    %1356 = vmatmul.mubr.f32.gmra.mrb[0].mxu0 %v1226
    %v1357 = vpop.f32.mrb[0].mxu0
    %v1358 = vadd.f32 0.0, %v1357
    %v1359 = vpop.f32.mrb[0].mxu0
    %1360 = vmatprep.mubr.f32.mxu0 0.0
    %1361 = vmatmul.mubr.f32.gmra.mrb[0].mxu0 %v1229
    %v1362 = vpop.f32.mrb[0].mxu0
    %v1363 = vadd.f32 0.0, %v1362
    %v1364 = vpop.f32.mrb[0].mxu0
    %1365 = vmatprep.mubr.f32.mxu0 0.0
    %1366 = vmatmul.mubr.f32.gmra.mrb[0].mxu0 %v1232
    %v1367 = vpop.f32.mrb[0].mxu0
    %v1368 = vadd.f32 0.0, %v1367
    %v1369 = vpop.f32.mrb[0].mxu0
    %1370 = vmatprep.mubr.f32.mxu0 0.0
    %1371 = vmatmul.mubr.f32.gmra.mrb[0].mxu0 %v1235
    %v1372 = vpop.f32.mrb[0].mxu0
    %v1373 = vadd.f32 0.0, %v1372
    %v1374 = vpop.f32.mrb[0].mxu0
    %1375 = vmatprep.mubr.f32.mxu0 0.0
    %1376 = vmatmul.mubr.f32.gmra.mrb[0].mxu0 %v1238
    %v1377 = vpop.f32.mrb[0].mxu0
    %v1378 = vadd.f32 0.0, %v1377
    %v1379 = vpop.f32.mrb[0].mxu0
    %1380 = vmatprep.mubr.f32.mxu0 0.0
    %1381 = vmatmul.mubr.f32.gmra.mrb[0].mxu0 %v1241
    %v1382 = vpop.f32.mrb[0].mxu0
    %v1383 = vadd.f32 0.0, %v1382
    %v1384 = vpop.f32.mrb[0].mxu0
    %1385 = vmatprep.mubr.f32.mxu0 0.0
    %1386 = vmatmul.mubr.f32.gmra.mrb[0].mxu0 %v1244
    %v1387 = vpop.f32.mrb[0].mxu0
    %v1388 = vadd.f32 0.0, %v1387
    %v1389 = vpop.f32.mrb[0].mxu0
    %1390 = vdwg.mxu0
    %v1391 = vmul.f32 %v1313, 1.442695
    %v1392 = vpow.pop %v1391
    %v1393 = vmul.f32 %v1318, 1.442695
    %v1394 = vpow.pop %v1393
    %v1395 = vmul.f32 %v1323, 1.442695
    %v1396 = vpow.pop %v1395
    %v1397 = vmul.f32 %v1328, 1.442695
    %v1398 = vpow.pop %v1397
    %v1399 = vmul.f32 %v1333, 1.442695
    %v1400 = vpow.pop %v1399
    %v1401 = vmul.f32 %v1338, 1.442695
    %v1402 = vpow.pop %v1401
    %v1403 = vmul.f32 %v1343, 1.442695
    %v1404 = vpow.pop %v1403
    %v1405 = vmul.f32 %v1348, 1.442695
    %v1406 = vpow.pop %v1405
    %v1407 = vmul.f32 %v1353, 1.442695
    %v1408 = vpow.pop %v1407
    %v1409 = vmul.f32 %v1358, 1.442695
    %v1410 = vpow.pop %v1409
    %v1411 = vmul.f32 %v1363, 1.442695
    %v1412 = vpow.pop %v1411
    %v1413 = vmul.f32 %v1368, 1.442695
    %v1414 = vpow.pop %v1413
    %v1415 = vmul.f32 %v1373, 1.442695
    %v1416 = vpow.pop %v1415
    %v1417 = vmul.f32 %v1378, 1.442695
    %v1418 = vpow.pop %v1417
    %v1419 = vmul.f32 %v1383, 1.442695
    %v1420 = vpow.pop %v1419
    %v1421 = vmul.f32 %v1388, 1.442695
    %v1422 = vpow.pop %v1421
    %1439 = vrot.lane.b32.xlu0 %v1392, 64
    %v1440 = vpop.permute.xlu0 %1439
    %1441 = vrot.lane.b32.xlu0 %v1394, 64
    %v1442 = vpop.permute.xlu0 %1441
    %1443 = vrot.lane.b32.xlu0 %v1396, 64
    %v1444 = vpop.permute.xlu0 %1443
    %1445 = vrot.lane.b32.xlu0 %v1398, 64
    %v1446 = vpop.permute.xlu0 %1445
    %1447 = vrot.lane.b32.xlu0 %v1400, 64
    %v1448 = vpop.permute.xlu0 %1447
    %1449 = vrot.lane.b32.xlu0 %v1402, 64
    %v1450 = vpop.permute.xlu0 %1449
    %1451 = vrot.lane.b32.xlu0 %v1404, 64
    %v1452 = vpop.permute.xlu0 %1451
    %1453 = vrot.lane.b32.xlu0 %v1406, 64
    %v1454 = vpop.permute.xlu0 %1453
    %1455 = vrot.lane.b32.xlu0 %v1408, 64
    %v1456 = vpop.permute.xlu0 %1455
    %1457 = vrot.lane.b32.xlu0 %v1410, 64
    %v1458 = vpop.permute.xlu0 %1457
    %1459 = vrot.lane.b32.xlu0 %v1412, 64
    %v1460 = vpop.permute.xlu0 %1459
    %1461 = vrot.lane.b32.xlu0 %v1414, 64
    %v1462 = vpop.permute.xlu0 %1461
    %1463 = vrot.lane.b32.xlu0 %v1416, 64
    %v1464 = vpop.permute.xlu0 %1463
    %1465 = vrot.lane.b32.xlu0 %v1418, 64
    %v1466 = vpop.permute.xlu0 %1465
    %1467 = vrot.lane.b32.xlu0 %v1420, 64
    %v1468 = vpop.permute.xlu0 %1467
    %1469 = vrot.lane.b32.xlu0 %v1422, 64
    %v1470 = vpop.permute.xlu0 %1469
    %v1487 = vsel %vm949, %v1110, %v1440
    %v1488 = vsel %vm949, %v1111, %v1442
    %v1489 = vsel %vm949, %v1112, %v1444
    %v1490 = vsel %vm949, %v1113, %v1446
    %v1491 = vsel %vm949, %v1114, %v1448
    %v1492 = vsel %vm949, %v1115, %v1450
    %v1493 = vsel %vm949, %v1116, %v1452
    %v1494 = vsel %vm949, %v1117, %v1454
    %v1495 = vsel %vm949, %v1118, %v1456
    %v1496 = vsel %vm949, %v1119, %v1458
    %v1497 = vsel %vm949, %v1120, %v1460
    %v1498 = vsel %vm949, %v1121, %v1462
    %v1499 = vsel %vm949, %v1122, %v1464
    %v1500 = vsel %vm949, %v1123, %v1466
    %v1501 = vsel %vm949, %v1124, %v1468
    %v1502 = vsel %vm949, %v1125, %v1470
    %1503 = vst [vmem:[%s13] sm:$0xff] %v1487
    %1504 = vst [vmem:[%s13 + $0x8] sm:$0xff] %v1488
    %1505 = vst [vmem:[%s13 + $0x10] sm:$0xff] %v1489
    %1506 = vst [vmem:[%s13 + $0x18] sm:$0xff] %v1490
    %1507 = vst [vmem:[%s13 + $0x20] sm:$0xff] %v1491
    %1508 = vst [vmem:[%s13 + $0x28] sm:$0xff] %v1492
    %1509 = vst [vmem:[%s13 + $0x30] sm:$0xff] %v1493
    %1510 = vst [vmem:[%s13 + $0x38] sm:$0xff] %v1494
    %1511 = vst [vmem:[%s13 + $0x40] sm:$0xff] %v1495
    %1512 = vst [vmem:[%s13 + $0x48] sm:$0xff] %v1496
    %1513 = vst [vmem:[%s13 + $0x50] sm:$0xff] %v1497
    %1514 = vst [vmem:[%s13 + $0x58] sm:$0xff] %v1498
    %1515 = vst [vmem:[%s13 + $0x60] sm:$0xff] %v1499
    %1516 = vst [vmem:[%s13 + $0x68] sm:$0xff] %v1500
    %1517 = vst [vmem:[%s13 + $0x70] sm:$0xff] %v1501
    %1518 = vst [vmem:[%s13 + $0x78] sm:$0xff] %v1502
  $region57: #{mnn_gnn_forward.1} parent=0 // pred_fallthru
    _
  // Predicated region
  $region58: #{mnn_gnn_forward.1} parent=0 // pred_check
    _
  $region59: #{mnn_gnn_forward.1} parent=0 // pred_check_branch
    %1520 = sbr.rel (0) target = $region61
  $region60: #{mnn_gnn_forward.1} parent=0 // pred_region
    _
  $region61: #{mnn_gnn_forward.1} parent=0 // pred_fallthru
    _
  // Predicated region
  $region62: #{mnn_gnn_forward.1} parent=0 // pred_check
    _
  $region63: #{mnn_gnn_forward.1} parent=0 // pred_check_branch
    %1522 = sbr.rel (0) target = $region65
  $region64: #{mnn_gnn_forward.1} parent=0 // pred_region
    _
  $region65: #{mnn_gnn_forward.1} parent=0 // pred_fallthru
    _

</llo_original>
